<compile_context>
chip_gen: v7x
topology: tpu7x:2x2x1
jax: 0.10.0
libtpu: 0.0.40
codegen_flags: <defaults>
</compile_context>

<pallas_src>
import jax
import jax.numpy as jnp
from jax.experimental import pallas as pl
from jax.experimental.pallas import tpu as pltpu

LEAKY_SLOPE = 0.01  # PyTorch nn.LeakyReLU default


def generate_centers(L, q_limits):
    lo, hi = q_limits
    step = (hi - lo) / (L - 1)
    return [float(lo + i * step) for i in range(L)]


# --------------------------------------------------------------------------
# Wrapper-side glue (XLA): channels-first im2col for a 5x5 / stride-2 / pad-2
# conv. Rows ordered (cin, kh, kw) to match PyTorch weight.reshape(Cout, -1);
# columns ordered (b, ho, wo).
# --------------------------------------------------------------------------
def im2col_cf(x_cbhw, k=5, stride=2, pad=2):
    C, B, H, W = x_cbhw.shape
    Ho = (H + 2 * pad - k) // stride + 1
    Wo = (W + 2 * pad - k) // stride + 1
    xp = jnp.pad(x_cbhw, ((0, 0), (0, 0), (pad, pad), (pad, pad)))
    taps = []
    for kh in range(k):
        for kw in range(k):
            taps.append(
                xp[:, :, kh:kh + stride * Ho:stride, kw:kw + stride * Wo:stride])
    pat = jnp.stack(taps, axis=1)                     # (C, 25, B, Ho, Wo)
    return pat.reshape(C * k * k, B * Ho * Wo), Ho, Wo


def _vmem_specs(n):
    return [pl.BlockSpec(memory_space=pltpu.MemorySpace.VMEM) for _ in range(n)]


# --------------------------------------------------------------------------
# Kernel 1/2: conv as matmul + bias + LeakyReLU, lane-dense (Cout, M) output.
# bf16 MXU operands, f32 accumulate, f32 elementwise, bf16 activation out.
# --------------------------------------------------------------------------
def conv_lrelu(patches_bf16, w_bf16, b_f32):
    N, K = w_bf16.shape
    _, M = patches_bf16.shape

    def kernel(p_ref, w_ref, b_ref, o_ref):
        y = jnp.dot(w_ref[...], p_ref[...], preferred_element_type=jnp.float32)
        y = y + b_ref[...]                                   # (N,1) lane-bcast
        y = jnp.where(y > 0, y, jnp.float32(LEAKY_SLOPE) * y)
        o_ref[...] = y.astype(o_ref.dtype)

    return pl.pallas_call(
        kernel,
        out_shape=jax.ShapeDtypeStruct((N, M), jnp.bfloat16),
        in_specs=_vmem_specs(3),
        out_specs=pl.BlockSpec(memory_space=pltpu.MemorySpace.VMEM),
    )(patches_bf16, w_bf16, b_f32)


# --------------------------------------------------------------------------
# Kernel 3: conv3 (matmul+bias+LeakyReLU)  +  Linear + Tanh + u + Quantizer,
# all fused.  Output is (latent, B); wrapper transposes to (B, latent).
# The Quantizer's forward VALUE is the hard nearest-center assignment
# (output.data = quant in the PyTorch module); the softmax path only shapes
# gradients and is not part of forward compute.
# --------------------------------------------------------------------------
def conv3_linear_tanh_quant(patches_bf16, w3_bf16, b3_f32, wf_f32, bf_f32,
                            uT_f32, centers, batch, hw):
    C3, _ = w3_bf16.shape
    Ld = wf_f32.shape[0]

    cs = [float(c) for c in centers]
    L = len(cs)
    lo = cs[0]
    step = (cs[-1] - cs[0]) / (L - 1) if L > 1 else 1.0
    uniform = L > 1 and all(abs(cs[i] - (lo + i * step)) < 1e-6 for i in range(L))
    inv_step = 1.0 / step if L > 1 else 1.0

    def quantize(t):
        if L == 1:
            return jnp.full_like(t, jnp.float32(cs[0]))
        if uniform:
            # Closed-form nearest equally-spaced center: ceil(x - 0.5) is
            # round-half-down, matching torch.min's first-index tie-breaking
            # (lower center wins on exact midpoints).
            idx = jnp.clip(
                jnp.ceil((t - jnp.float32(lo)) * jnp.float32(inv_step)
                         - jnp.float32(0.5)),
                0.0, float(L - 1))
            q = jnp.zeros_like(t)
            for i, c in enumerate(cs):      # exact f32 center values
                q = jnp.where(idx == jnp.float32(i), jnp.float32(c), q)
            return q
        # General (non-uniform) centers: first minimum wins, like torch.min.
        best = jnp.full(t.shape, jnp.float32(1e30))
        q = jnp.zeros_like(t)
        for c in cs:
            d = jnp.abs(t - jnp.float32(c))
            take = d < best
            q = jnp.where(take, jnp.float32(c), q)
            best = jnp.where(take, d, best)
        return q

    def kernel(p_ref, w3_ref, b3_ref, wf_ref, bf_ref, u_ref, o_ref):
        y = jnp.dot(w3_ref[...], p_ref[...], preferred_element_type=jnp.float32)
        y = y + b3_ref[...]
        act = jnp.where(y > 0, y, jnp.float32(LEAKY_SLOPE) * y)   # (C3, B*hw)
        wf = wf_ref[...]                                          # (Ld, C3, hw)
        for b in range(batch):                                    # B is tiny
            s_b = act[:, b * hw:(b + 1) * hw]                     # (C3, hw)
            prod = wf * s_b[None, :, :]                           # (Ld, C3, hw)
            z = jnp.sum(jnp.sum(prod, axis=2), axis=1, keepdims=True)  # (Ld,1)
            t = jnp.tanh(z + bf_ref[...]) + u_ref[:, b:b + 1]
            o_ref[:, b:b + 1] = quantize(t)

    return pl.pallas_call(
        kernel,
        out_shape=jax.ShapeDtypeStruct((Ld, batch), jnp.float32),
        in_specs=_vmem_specs(6),
        out_specs=pl.BlockSpec(memory_space=pltpu.MemorySpace.VMEM),
    )(patches_bf16, w3_bf16, b3_f32, wf_f32, bf_f32, uT_f32)


# --------------------------------------------------------------------------
# Parameter prep (once, outside jit): PyTorch layouts -> matmul-ready layouts.
#   conv w: (Cout, Cin, 5, 5) -> (Cout, Cin*25) bf16
#   biases: (N,) -> (N, 1) f32
#   final w: (Ld, C3*hw) -> (Ld, C3, hw) f32  (NCHW flatten folded in)
# --------------------------------------------------------------------------
def prep_params(params):
    w1, b1, w2, b2, w3, b3, wf, bfin = params

    def cw(w):
        return w.reshape(w.shape[0], -1).astype(jnp.bfloat16)

    def cb(b):
        return b.reshape(-1, 1).astype(jnp.float32)

    C3 = w3.shape[0]
    hw = wf.shape[1] // C3
    wf_r = wf.reshape(wf.shape[0], C3, hw).astype(jnp.float32)
    return (cw(w1), cb(b1), cw(w2), cb(b2), cw(w3), cb(b3), wf_r, cb(bfin))


def encoder_svhn_forward(x_nchw, u, prepped, centers):
    """EncoderSVHN.forward (stochastic=True, quantize_latents=True)."""
    w1m, b1c, w2m, b2c, w3m, b3c, wf_r, bfc = prepped
    B = x_nchw.shape[0]

    # channels-first (C, B, H, W) so every im2col is transpose-free; bf16 feed.
    x = jnp.transpose(x_nchw, (1, 0, 2, 3)).astype(jnp.bfloat16)

    p, Ho, Wo = im2col_cf(x)                       # conv1 + LeakyReLU
    a = conv_lrelu(p, w1m, b1c)
    x = a.reshape(w1m.shape[0], B, Ho, Wo)

    p, Ho, Wo = im2col_cf(x)                       # conv2 + LeakyReLU
    a = conv_lrelu(p, w2m, b2c)
    x = a.reshape(w2m.shape[0], B, Ho, Wo)

    p, Ho, Wo = im2col_cf(x)                       # conv3 + Linear+Tanh+u+quant
    outT = conv3_linear_tanh_quant(
        p, w3m, b3c, wf_r, bfc,
        jnp.transpose(u).astype(jnp.float32),
        centers, B, Ho * Wo)
    return jnp.transpose(outT)                     # (B, latent)


if __name__ == "__main__":
    # Module hyper-params (input_size=32 implied by conv_flat_dim = ilw*4*4*4)
    n_channel = 3
    latent_dim = 8
    ls = 0.25
    ilw = int(ls * 64)                 # 16
    input_size = 32
    L, q_limits = 4, (-1.0, 1.0)
    batch = 2

    centers = generate_centers(L, q_limits)
    alpha = (q_limits[1] - q_limits[0]) / (L - 1)    # stochastic noise scale
    conv_flat_dim = ilw * 4 * 4 * 4                  # 1024

    key = jax.random.PRNGKey(0)
    ks = jax.random.split(key, 10)

    # Deterministic synthetic parameters in PyTorch layouts.
    w1 = 0.10 * jax.random.normal(ks[0], (ilw, n_channel, 5, 5), jnp.float32)
    b1 = 0.01 * jax.random.normal(ks[1], (ilw,), jnp.float32)
    w2 = 0.10 * jax.random.normal(ks[2], (2 * ilw, ilw, 5, 5), jnp.float32)
    b2 = 0.01 * jax.random.normal(ks[3], (2 * ilw,), jnp.float32)
    w3 = 0.10 * jax.random.normal(ks[4], (4 * ilw, 2 * ilw, 5, 5), jnp.float32)
    b3 = 0.01 * jax.random.normal(ks[5], (4 * ilw,), jnp.float32)
    wf = 0.05 * jax.random.normal(ks[6], (latent_dim, conv_flat_dim), jnp.float32)
    bf = 0.01 * jax.random.normal(ks[7], (latent_dim,), jnp.float32)
    params = (w1, b1, w2, b2, w3, b3, wf, bf)
    prepped = prep_params(params)

    # Inputs: NCHW image (PyTorch convention) and stochastic noise u.
    x = jax.random.normal(ks[8], (batch, n_channel, input_size, input_size),
                          jnp.float32)
    u = alpha * (jax.random.uniform(ks[9], (batch, latent_dim),
                                    dtype=jnp.float32) - 0.5)

    fwd = jax.jit(encoder_svhn_forward, static_argnums=(3,))
    out = fwd(x, u, prepped, tuple(centers))
    out = jax.block_until_ready(out)

    assert out.shape == (batch, latent_dim), out.shape
    # Every output must be exactly one of the quantizer centers.
    assert bool(jnp.all(jnp.min(jnp.abs(out[..., None] -
                                        jnp.asarray(centers)), axis=-1) == 0))
    print("KERNEL_OK")
</pallas_src>

<mosaic_0001>
module attributes {stable_mosaic.version = 11 : i64} {
  func.func @kernel(%arg0: memref<75x512xbf16, #tpu.memory_space<vmem>>, %arg1: memref<16x75xbf16, #tpu.memory_space<vmem>>, %arg2: memref<16x1xf32, #tpu.memory_space<vmem>>, %arg3: memref<16x512xbf16, #tpu.memory_space<vmem>>) attributes {dimension_semantics = [], scalar_prefetch = 0 : i64, scratch_operands = 0 : i64, tpu.core_type = #tpu.core_type<tc>} {
    %c0 = arith.constant 0 : index
    %c0_0 = arith.constant 0 : index
    %0 = vector.load %arg1[%c0, %c0_0] : memref<16x75xbf16, #tpu.memory_space<vmem>>, vector<16x75xbf16>
    %c0_1 = arith.constant 0 : index
    %c0_2 = arith.constant 0 : index
    %1 = vector.load %arg0[%c0_1, %c0_2] : memref<75x512xbf16, #tpu.memory_space<vmem>>, vector<75x512xbf16>
    %cst = arith.constant dense<0.000000e+00> : vector<16x512xf32>
    %2 = tpu.matmul %0, %1, %cst {dimension_numbers = #tpu.dot_dimension_numbers<[1], [0], [0], [1], [0, 0, 1, 1], [], []>} : vector<16x75xbf16>, vector<75x512xbf16>, vector<16x512xf32> -> vector<16x512xf32>
    %c0_3 = arith.constant 0 : index
    %c0_4 = arith.constant 0 : index
    %3 = vector.load %arg2[%c0_3, %c0_4] : memref<16x1xf32, #tpu.memory_space<vmem>>, vector<16x1xf32>
    %4 = vector.broadcast %3 : vector<16x1xf32> to vector<16x512xf32>
    %5 = arith.addf %2, %4 : vector<16x512xf32>
    %cst_5 = arith.constant 0.000000e+00 : f32
    %6 = vector.broadcast %cst_5 : f32 to vector<16x512xf32>
    %7 = arith.cmpf ogt, %5, %6 : vector<16x512xf32>
    %cst_6 = arith.constant 0.00999999977 : f32
    %8 = vector.broadcast %cst_6 : f32 to vector<16x512xf32>
    %9 = arith.mulf %8, %5 : vector<16x512xf32>
    %10 = arith.select %7, %5, %9 : vector<16x512xi1>, vector<16x512xf32>
    %11 = arith.truncf %10 : vector<16x512xf32> to vector<16x512xbf16>
    %c0_7 = arith.constant 0 : index
    %c0_8 = arith.constant 0 : index
    %12 = vector.load %arg3[%c0_7, %c0_8] : memref<16x512xbf16, #tpu.memory_space<vmem>>, vector<16x512xbf16>
    tpu.vector_store %arg3[%c0_7, %c0_8], %11 {strides = array<i32>} : memref<16x512xbf16, #tpu.memory_space<vmem>>, vector<16x512xbf16>,
    return
  }
}

module attributes {stable_mosaic.version = 11 : i64} {
  func.func @kernel(%arg0: memref<400x128xbf16, #tpu.memory_space<vmem>>, %arg1: memref<32x400xbf16, #tpu.memory_space<vmem>>, %arg2: memref<32x1xf32, #tpu.memory_space<vmem>>, %arg3: memref<32x128xbf16, #tpu.memory_space<vmem>>) attributes {dimension_semantics = [], scalar_prefetch = 0 : i64, scratch_operands = 0 : i64, tpu.core_type = #tpu.core_type<tc>} {
    %c0 = arith.constant 0 : index
    %c0_0 = arith.constant 0 : index
    %0 = vector.load %arg1[%c0, %c0_0] : memref<32x400xbf16, #tpu.memory_space<vmem>>, vector<32x400xbf16>
    %c0_1 = arith.constant 0 : index
    %c0_2 = arith.constant 0 : index
    %1 = vector.load %arg0[%c0_1, %c0_2] : memref<400x128xbf16, #tpu.memory_space<vmem>>, vector<400x128xbf16>
    %cst = arith.constant dense<0.000000e+00> : vector<32x128xf32>
    %2 = tpu.matmul %0, %1, %cst {dimension_numbers = #tpu.dot_dimension_numbers<[1], [0], [0], [1], [0, 0, 1, 1], [], []>} : vector<32x400xbf16>, vector<400x128xbf16>, vector<32x128xf32> -> vector<32x128xf32>
    %c0_3 = arith.constant 0 : index
    %c0_4 = arith.constant 0 : index
    %3 = vector.load %arg2[%c0_3, %c0_4] : memref<32x1xf32, #tpu.memory_space<vmem>>, vector<32x1xf32>
    %4 = vector.broadcast %3 : vector<32x1xf32> to vector<32x128xf32>
    %5 = arith.addf %2, %4 : vector<32x128xf32>
    %cst_5 = arith.constant 0.000000e+00 : f32
    %6 = vector.broadcast %cst_5 : f32 to vector<32x128xf32>
    %7 = arith.cmpf ogt, %5, %6 : vector<32x128xf32>
    %cst_6 = arith.constant 0.00999999977 : f32
    %8 = vector.broadcast %cst_6 : f32 to vector<32x128xf32>
    %9 = arith.mulf %8, %5 : vector<32x128xf32>
    %10 = arith.select %7, %5, %9 : vector<32x128xi1>, vector<32x128xf32>
    %11 = arith.truncf %10 : vector<32x128xf32> to vector<32x128xbf16>
    %c0_7 = arith.constant 0 : index
    %c0_8 = arith.constant 0 : index
    %12 = vector.load %arg3[%c0_7, %c0_8] : memref<32x128xbf16, #tpu.memory_space<vmem>>, vector<32x128xbf16>
    tpu.vector_store %arg3[%c0_7, %c0_8], %11 {strides = array<i32>} : memref<32x128xbf16, #tpu.memory_space<vmem>>, vector<32x128xbf16>,
    return
  }
}

module attributes {stable_mosaic.version = 11 : i64} {
  func.func @kernel(%arg0: memref<800x32xbf16, #tpu.memory_space<vmem>>, %arg1: memref<64x800xbf16, #tpu.memory_space<vmem>>, %arg2: memref<64x1xf32, #tpu.memory_space<vmem>>, %arg3: memref<8x64x16xf32, #tpu.memory_space<vmem>>, %arg4: memref<8x1xf32, #tpu.memory_space<vmem>>, %arg5: memref<8x2xf32, #tpu.memory_space<vmem>>, %arg6: memref<8x2xf32, #tpu.memory_space<vmem>>) attributes {dimension_semantics = [], scalar_prefetch = 0 : i64, scratch_operands = 0 : i64, tpu.core_type = #tpu.core_type<tc>} {
    %c0 = arith.constant 0 : index
    %c0_0 = arith.constant 0 : index
    %0 = vector.load %arg1[%c0, %c0_0] : memref<64x800xbf16, #tpu.memory_space<vmem>>, vector<64x800xbf16>
    %c0_1 = arith.constant 0 : index
    %c0_2 = arith.constant 0 : index
    %1 = vector.load %arg0[%c0_1, %c0_2] : memref<800x32xbf16, #tpu.memory_space<vmem>>, vector<800x32xbf16>
    %cst = arith.constant dense<0.000000e+00> : vector<64x32xf32>
    %2 = tpu.matmul %0, %1, %cst {dimension_numbers = #tpu.dot_dimension_numbers<[1], [0], [0], [1], [0, 0, 1, 1], [], []>} : vector<64x800xbf16>, vector<800x32xbf16>, vector<64x32xf32> -> vector<64x32xf32>
    %c0_3 = arith.constant 0 : index
    %c0_4 = arith.constant 0 : index
    %3 = vector.load %arg2[%c0_3, %c0_4] : memref<64x1xf32, #tpu.memory_space<vmem>>, vector<64x1xf32>
    %4 = vector.broadcast %3 : vector<64x1xf32> to vector<64x32xf32>
    %5 = arith.addf %2, %4 : vector<64x32xf32>
    %cst_5 = arith.constant 0.000000e+00 : f32
    %6 = vector.broadcast %cst_5 : f32 to vector<64x32xf32>
    %7 = arith.cmpf ogt, %5, %6 : vector<64x32xf32>
    %cst_6 = arith.constant 0.00999999977 : f32
    %8 = vector.broadcast %cst_6 : f32 to vector<64x32xf32>
    %9 = arith.mulf %8, %5 : vector<64x32xf32>
    %10 = arith.select %7, %5, %9 : vector<64x32xi1>, vector<64x32xf32>
    %c0_7 = arith.constant 0 : index
    %c0_8 = arith.constant 0 : index
    %c0_9 = arith.constant 0 : index
    %11 = vector.load %arg3[%c0_7, %c0_8, %c0_9] : memref<8x64x16xf32, #tpu.memory_space<vmem>>, vector<8x64x16xf32>
    %12 = vector.extract_strided_slice %10 {offsets = [0, 0], sizes = [64, 16], strides = [1, 1]} : vector<64x32xf32> to vector<64x16xf32>
    %13 = vector.shape_cast %12 : vector<64x16xf32> to vector<1x64x16xf32>
    %14 = vector.broadcast %13 : vector<1x64x16xf32> to vector<8x64x16xf32>
    %15 = arith.mulf %11, %14 : vector<8x64x16xf32>
    %cst_10 = arith.constant dense<0.000000e+00> : vector<8x64xf32>
    %16 = vector.multi_reduction <add>, %15, %cst_10 [2] : vector<8x64x16xf32> to vector<8x64xf32>
    %cst_11 = arith.constant dense<0.000000e+00> : vector<8xf32>
    %17 = vector.multi_reduction <add>, %16, %cst_11 [1] : vector<8x64xf32> to vector<8xf32>
    %18 = vector.shape_cast %17 : vector<8xf32> to vector<8x1xf32>
    %c0_12 = arith.constant 0 : index
    %c0_13 = arith.constant 0 : index
    %19 = vector.load %arg4[%c0_12, %c0_13] : memref<8x1xf32, #tpu.memory_space<vmem>>, vector<8x1xf32>
    %20 = arith.addf %18, %19 : vector<8x1xf32>
    %21 = math.tanh %20 : vector<8x1xf32>
    %c0_14 = arith.constant 0 : index
    %c0_15 = arith.constant 0 : index
    %22 = vector.load %arg5[%c0_14, %c0_15] : memref<8x2xf32, #tpu.memory_space<vmem>>, vector<8x1xf32>
    %23 = arith.addf %21, %22 : vector<8x1xf32>
    %cst_16 = arith.constant -1.000000e+00 : f32
    %24 = vector.broadcast %cst_16 : f32 to vector<8x1xf32>
    %25 = arith.subf %23, %24 : vector<8x1xf32>
    %cst_17 = arith.constant 1.500000e+00 : f32
    %26 = vector.broadcast %cst_17 : f32 to vector<8x1xf32>
    %27 = arith.mulf %25, %26 : vector<8x1xf32>
    %cst_18 = arith.constant 5.000000e-01 : f32
    %28 = vector.broadcast %cst_18 : f32 to vector<8x1xf32>
    %29 = arith.subf %27, %28 : vector<8x1xf32>
    %30 = math.ceil %29 : vector<8x1xf32>
    %cst_19 = arith.constant 0.000000e+00 : f32
    %cst_20 = arith.constant 3.000000e+00 : f32
    %31 = vector.broadcast %cst_19 : f32 to vector<8x1xf32>
    %32 = arith.maximumf %31, %30 : vector<8x1xf32>
    %33 = vector.broadcast %cst_20 : f32 to vector<8x1xf32>
    %34 = arith.minimumf %33, %32 : vector<8x1xf32>
    %cst_21 = arith.constant 0.000000e+00 : f32
    %35 = vector.broadcast %cst_21 : f32 to vector<8x1xf32>
    %cst_22 = arith.constant 0.000000e+00 : f32
    %36 = vector.broadcast %cst_22 : f32 to vector<8x1xf32>
    %37 = arith.cmpf oeq, %34, %36 : vector<8x1xf32>
    %cst_23 = arith.constant -1.000000e+00 : f32
    %38 = vector.broadcast %cst_23 : f32 to vector<8x1xf32>
    %39 = arith.select %37, %38, %35 : vector<8x1xi1>, vector<8x1xf32>
    %cst_24 = arith.constant 1.000000e+00 : f32
    %40 = vector.broadcast %cst_24 : f32 to vector<8x1xf32>
    %41 = arith.cmpf oeq, %34, %40 : vector<8x1xf32>
    %cst_25 = arith.constant -0.333333343 : f32
    %42 = vector.broadcast %cst_25 : f32 to vector<8x1xf32>
    %43 = arith.select %41, %42, %39 : vector<8x1xi1>, vector<8x1xf32>
    %cst_26 = arith.constant 2.000000e+00 : f32
    %44 = vector.broadcast %cst_26 : f32 to vector<8x1xf32>
    %45 = arith.cmpf oeq, %34, %44 : vector<8x1xf32>
    %cst_27 = arith.constant 0.333333343 : f32
    %46 = vector.broadcast %cst_27 : f32 to vector<8x1xf32>
    %47 = arith.select %45, %46, %43 : vector<8x1xi1>, vector<8x1xf32>
    %cst_28 = arith.constant 3.000000e+00 : f32
    %48 = vector.broadcast %cst_28 : f32 to vector<8x1xf32>
    %49 = arith.cmpf oeq, %34, %48 : vector<8x1xf32>
    %cst_29 = arith.constant 1.000000e+00 : f32
    %50 = vector.broadcast %cst_29 : f32 to vector<8x1xf32>
    %51 = arith.select %49, %50, %47 : vector<8x1xi1>, vector<8x1xf32>
    %c0_30 = arith.constant 0 : index
    %c0_31 = arith.constant 0 : index
    %52 = vector.load %arg6[%c0_30, %c0_31] : memref<8x2xf32, #tpu.memory_space<vmem>>, vector<8x1xf32>
    tpu.vector_store %arg6[%c0_30, %c0_31], %51 {strides = array<i32>} : memref<8x2xf32, #tpu.memory_space<vmem>>, vector<8x1xf32>,
    %53 = vector.extract_strided_slice %10 {offsets = [0, 16], sizes = [64, 16], strides = [1, 1]} : vector<64x32xf32> to vector<64x16xf32>
    %54 = vector.shape_cast %53 : vector<64x16xf32> to vector<1x64x16xf32>
    %55 = vector.broadcast %54 : vector<1x64x16xf32> to vector<8x64x16xf32>
    %56 = arith.mulf %11, %55 : vector<8x64x16xf32>
    %cst_32 = arith.constant dense<0.000000e+00> : vector<8x64xf32>
    %57 = vector.multi_reduction <add>, %56, %cst_32 [2] : vector<8x64x16xf32> to vector<8x64xf32>
    %cst_33 = arith.constant dense<0.000000e+00> : vector<8xf32>
    %58 = vector.multi_reduction <add>, %57, %cst_33 [1] : vector<8x64xf32> to vector<8xf32>
    %59 = vector.shape_cast %58 : vector<8xf32> to vector<8x1xf32>
    %c0_34 = arith.constant 0 : index
    %c0_35 = arith.constant 0 : index
    %60 = vector.load %arg4[%c0_34, %c0_35] : memref<8x1xf32, #tpu.memory_space<vmem>>, vector<8x1xf32>
    %61 = arith.addf %59, %60 : vector<8x1xf32>
    %62 = math.tanh %61 : vector<8x1xf32>
    %c0_36 = arith.constant 0 : index
    %c1 = arith.constant 1 : index
    %63 = vector.load %arg5[%c0_36, %c1] : memref<8x2xf32, #tpu.memory_space<vmem>>, vector<8x1xf32>
    %64 = arith.addf %62, %63 : vector<8x1xf32>
    %cst_37 = arith.constant -1.000000e+00 : f32
    %65 = vector.broadcast %cst_37 : f32 to vector<8x1xf32>
    %66 = arith.subf %64, %65 : vector<8x1xf32>
    %cst_38 = arith.constant 1.500000e+00 : f32
    %67 = vector.broadcast %cst_38 : f32 to vector<8x1xf32>
    %68 = arith.mulf %66, %67 : vector<8x1xf32>
    %cst_39 = arith.constant 5.000000e-01 : f32
    %69 = vector.broadcast %cst_39 : f32 to vector<8x1xf32>
    %70 = arith.subf %68, %69 : vector<8x1xf32>
    %71 = math.ceil %70 : vector<8x1xf32>
    %cst_40 = arith.constant 0.000000e+00 : f32
    %cst_41 = arith.constant 3.000000e+00 : f32
    %72 = vector.broadcast %cst_40 : f32 to vector<8x1xf32>
    %73 = arith.maximumf %72, %71 : vector<8x1xf32>
    %74 = vector.broadcast %cst_41 : f32 to vector<8x1xf32>
    %75 = arith.minimumf %74, %73 : vector<8x1xf32>
    %cst_42 = arith.constant 0.000000e+00 : f32
    %76 = vector.broadcast %cst_42 : f32 to vector<8x1xf32>
    %cst_43 = arith.constant 0.000000e+00 : f32
    %77 = vector.broadcast %cst_43 : f32 to vector<8x1xf32>
    %78 = arith.cmpf oeq, %75, %77 : vector<8x1xf32>
    %cst_44 = arith.constant -1.000000e+00 : f32
    %79 = vector.broadcast %cst_44 : f32 to vector<8x1xf32>
    %80 = arith.select %78, %79, %76 : vector<8x1xi1>, vector<8x1xf32>
    %cst_45 = arith.constant 1.000000e+00 : f32
    %81 = vector.broadcast %cst_45 : f32 to vector<8x1xf32>
    %82 = arith.cmpf oeq, %75, %81 : vector<8x1xf32>
    %cst_46 = arith.constant -0.333333343 : f32
    %83 = vector.broadcast %cst_46 : f32 to vector<8x1xf32>
    %84 = arith.select %82, %83, %80 : vector<8x1xi1>, vector<8x1xf32>
    %cst_47 = arith.constant 2.000000e+00 : f32
    %85 = vector.broadcast %cst_47 : f32 to vector<8x1xf32>
    %86 = arith.cmpf oeq, %75, %85 : vector<8x1xf32>
    %cst_48 = arith.constant 0.333333343 : f32
    %87 = vector.broadcast %cst_48 : f32 to vector<8x1xf32>
    %88 = arith.select %86, %87, %84 : vector<8x1xi1>, vector<8x1xf32>
    %cst_49 = arith.constant 3.000000e+00 : f32
    %89 = vector.broadcast %cst_49 : f32 to vector<8x1xf32>
    %90 = arith.cmpf oeq, %75, %89 : vector<8x1xf32>
    %cst_50 = arith.constant 1.000000e+00 : f32
    %91 = vector.broadcast %cst_50 : f32 to vector<8x1xf32>
    %92 = arith.select %90, %91, %88 : vector<8x1xi1>, vector<8x1xf32>
    %c0_51 = arith.constant 0 : index
    %c1_52 = arith.constant 1 : index
    %93 = vector.load %arg6[%c0_51, %c1_52] : memref<8x2xf32, #tpu.memory_space<vmem>>, vector<8x1xf32>
    tpu.vector_store %arg6[%c0_51, %c1_52], %92 {strides = array<i32>} : memref<8x2xf32, #tpu.memory_space<vmem>>, vector<8x1xf32>,
    return
  }
}

</mosaic_0001>

<llo_original>
// kernel: encoder_svhn_forward.3
$region0: #{encoder_svhn_forward.3}
  #allocation0 [shape = 'u32[]', space=smem, size = 0x4, offset = 0x4, fixed_abs, tag = 'smem constant byte address 0x4 - core index']
  #allocation1 [shape = 'u32[144,128]{1,0:T(1,128)}', space=vmem, size = 0x12000, scoped, tag = 'internal scratch']
  %s0 = inlined_call_operand.vmem [shape: bf16[75,512], index: 0, kind: input, shape index: {}]
  %s1 = inlined_call_operand.vmem [shape: bf16[16,75], index: 1, kind: input, shape index: {}]
  %s2 = inlined_call_operand.vmem [shape: f32[16,1], index: 2, kind: input, shape index: {}]
  %s3 = inlined_call_operand.vmem [shape: bf16[16,512], index: 3, kind: output, shape index: {}]
  %s4 = sld [smem:[#allocation0]]
  $region22: #{encoder_svhn_forward.3} parent=0
    _
  %s6 = ssub.s32 1, %s4
  %s7 = scalar_select 0, %s6, %s4
  // Predicated region
  $region2: #{encoder_svhn_forward.3} parent=0 // pred_check
    _
  $region3: #{encoder_svhn_forward.3} parent=0 // pred_check_branch
    %9 = sbr.rel (0) target = $region5
  $region4: #{encoder_svhn_forward.3} parent=0 // pred_region
    _
  $region5: #{encoder_svhn_forward.3} parent=0 // pred_fallthru
    _
  // Predicated region
  $region6: #{encoder_svhn_forward.3} parent=0 // pred_check
    _
  $region7: #{encoder_svhn_forward.3} parent=0 // pred_check_branch
    %11 = sbr.rel (0) target = $region9
  $region8: #{encoder_svhn_forward.3} parent=0 // pred_region
    _
  $region9: #{encoder_svhn_forward.3} parent=0 // pred_fallthru
    _
  // Predicated region
  $region10: #{encoder_svhn_forward.3} parent=0 // pred_check
    _
  $region11: #{encoder_svhn_forward.3} parent=0 // pred_check_branch
    %13 = sbr.rel (0) target = $region13
  $region12: #{encoder_svhn_forward.3} parent=0 // pred_region
    _
  $region13: #{encoder_svhn_forward.3} parent=0 // pred_fallthru
    _
  %v15 = vld [vmem:[%s1] sm:$0xf]
  %v16 = vld [vmem:[%s1 + $0x4] sm:$0xf]
  %v17 = vld [vmem:[%s0] sm:$0xff]
  %v18 = vld [vmem:[%s0 + $0x8] sm:$0xff]
  %v19 = vld [vmem:[%s0 + $0x10] sm:$0xff]
  %v20 = vld [vmem:[%s0 + $0x18] sm:$0xff]
  %v21 = vld [vmem:[%s0 + $0x20] sm:$0xff]
  %v22 = vld [vmem:[%s0 + $0x28] sm:$0xff]
  %v23 = vld [vmem:[%s0 + $0x30] sm:$0xff]
  %v24 = vld [vmem:[%s0 + $0x38] sm:$0xff]
  %v25 = vld [vmem:[%s0 + $0x40] sm:$0xff]
  %v26 = vld [vmem:[%s0 + $0x48] sm:$0xff]
  %v27 = vld [vmem:[%s0 + $0x50] sm:$0xff]
  %v28 = vld [vmem:[%s0 + $0x58] sm:$0xff]
  %v29 = vld [vmem:[%s0 + $0x60] sm:$0xff]
  %v30 = vld [vmem:[%s0 + $0x68] sm:$0xff]
  %v31 = vld [vmem:[%s0 + $0x70] sm:$0xff]
  %v32 = vld [vmem:[%s0 + $0x78] sm:$0xff]
  %v33 = vld [vmem:[%s0 + $0x80] sm:$0xff]
  %v34 = vld [vmem:[%s0 + $0x88] sm:$0xff]
  %v35 = vld [vmem:[%s0 + $0x90] sm:$0x33]
  %v36 = vld [vmem:[%s0 + $0x98] sm:$0x33]
  %v37 = vld [vmem:[%s2] sm:$0xff]
  %v38 = vld [vmem:[%s2 + $0x8] sm:$0xff]
  %40 = vset.pattern.permute.xlu0 0
  %41 = vperm.xlu0 %40, %v37
  %v42 = vpop.permute.xlu0 %41
  %45 = vset.pattern.permute.xlu0 0
  %46 = vperm.xlu0 %45, %v38
  %v47 = vpop.permute.xlu0 %46
  %v51 = vunpack.c.l.b16 %v15
  %v52 = vunpack.c.l.b16 %v16
  %v53 = vpack.c.b16 %v52, %v51
  %v74 = vunpack.c.l.b16 %v17
  %v75 = vunpack.c.h.b16 %v17
  %v76 = vunpack.c.l.b16 %v18
  %v77 = vunpack.c.h.b16 %v18
  %v78 = vunpack.c.l.b16 %v19
  %v79 = vunpack.c.h.b16 %v19
  %v80 = vunpack.c.l.b16 %v20
  %v81 = vunpack.c.h.b16 %v20
  %v82 = vunpack.c.l.b16 %v21
  %v83 = vunpack.c.h.b16 %v21
  %v84 = vunpack.c.l.b16 %v22
  %v85 = vunpack.c.h.b16 %v22
  %v86 = vunpack.c.l.b16 %v23
  %v87 = vunpack.c.h.b16 %v23
  %v88 = vunpack.c.l.b16 %v24
  %v89 = vunpack.c.h.b16 %v24
  %v90 = vunpack.c.l.b16 %v25
  %v91 = vunpack.c.h.b16 %v25
  %v92 = vunpack.c.l.b16 %v26
  %v93 = vunpack.c.h.b16 %v26
  %v94 = vunpack.c.l.b16 %v27
  %v95 = vunpack.c.h.b16 %v27
  %v96 = vunpack.c.l.b16 %v28
  %v97 = vunpack.c.h.b16 %v28
  %v98 = vunpack.c.l.b16 %v29
  %v99 = vunpack.c.h.b16 %v29
  %v100 = vunpack.c.l.b16 %v30
  %v101 = vunpack.c.h.b16 %v30
  %v102 = vunpack.c.l.b16 %v31
  %v103 = vunpack.c.h.b16 %v31
  %v104 = vunpack.c.l.b16 %v32
  %v105 = vunpack.c.h.b16 %v32
  %v106 = vunpack.c.l.b16 %v33
  %v107 = vunpack.c.h.b16 %v33
  %v108 = vunpack.c.l.b16 %v34
  %v109 = vunpack.c.h.b16 %v34
  %v110 = vunpack.c.l.b16 %v35
  %v111 = vunpack.c.h.b16 %v35
  %v112 = vunpack.c.l.b16 %v36
  %v113 = vunpack.c.h.b16 %v36
  %v114 = vpack.c.b16 %v78, %v74
  %v115 = vpack.c.b16 %v79, %v75
  %v116 = vpack.c.b16 %v80, %v76
  %v117 = vpack.c.b16 %v81, %v77
  %v118 = vpack.c.b16 %v86, %v82
  %v119 = vpack.c.b16 %v87, %v83
  %v120 = vpack.c.b16 %v88, %v84
  %v121 = vpack.c.b16 %v89, %v85
  %v122 = vpack.c.b16 %v94, %v90
  %v123 = vpack.c.b16 %v95, %v91
  %v124 = vpack.c.b16 %v96, %v92
  %v125 = vpack.c.b16 %v97, %v93
  %v126 = vpack.c.b16 %v102, %v98
  %v127 = vpack.c.b16 %v103, %v99
  %v128 = vpack.c.b16 %v104, %v100
  %v129 = vpack.c.b16 %v105, %v101
  %v130 = vpack.c.b16 %v110, %v106
  %v131 = vpack.c.b16 %v111, %v107
  %v132 = vpack.c.b16 %v112, %v108
  %v133 = vpack.c.b16 %v113, %v109
  %vm150 = vcmask 613376
  %v152 = vsel %vm150, %v53, 0
  %vm154 = vcmask 1044480
  %vm155 = vcmask 1045504
  %v156 = vsel %vm154, 4294967295, 65535
  %v157 = vsel %vm155, %v156, 0
  %v159 = vand.u32 %v130, %v157
  %v162 = vand.u32 %v131, %v157
  %v165 = vand.u32 %v132, %v157
  %v168 = vand.u32 %v133, %v157
  %170 = vmatprep.subr.bf16.mxu0 %v115
  %171 = vmatpush1.bf16.msra.mxu0 %v114
  %172 = vmatprep.subr.bf16.mxu0 %v119
  %173 = vmatpush1.bf16.msra.mxu0 %v118
  %174 = vmatprep.subr.bf16.mxu0 %v123
  %175 = vmatpush1.bf16.msra.mxu0 %v122
  %176 = vmatprep.subr.bf16.mxu0 %v127
  %177 = vmatpush1.bf16.msra.mxu0 %v126
  %178 = vmatprep.subr.bf16.mxu0 %v162
  %179 = vmatpush1.bf16.msra.mxu0 %v159
  %180 = vmatprep.subr.bf16.mxu0 0
  %181 = vmatpush1.bf16.msra.mxu0 0
  %182 = vmatprep.subr.bf16.mxu0 0
  %183 = vmatpush1.bf16.msra.mxu0 0
  %184 = vmatprep.subr.bf16.mxu0 0
  %185 = vmatpush1.bf16.msra.mxu0 0
  %186 = vmatprep.subr.bf16.mxu0 0
  %187 = vmatpush1.bf16.msra.mxu0 0
  %188 = vmatprep.subr.bf16.mxu0 0
  %189 = vmatpush1.bf16.msra.mxu0 0
  %190 = vmatprep.subr.bf16.mxu0 0
  %191 = vmatpush1.bf16.msra.mxu0 0
  %192 = vmatprep.subr.bf16.mxu0 0
  %193 = vmatpush1.bf16.msra.mxu0 0
  %194 = vmatprep.subr.bf16.mxu0 0
  %195 = vmatpush1.bf16.msra.mxu0 0
  %196 = vmatprep.subr.bf16.mxu0 0
  %197 = vmatpush1.bf16.msra.mxu0 0
  %198 = vmatprep.subr.bf16.mxu0 0
  %199 = vmatpush1.bf16.msra.mxu0 0
  %200 = vmatprep.subr.bf16.mxu0 0
  %201 = vmatpush1.bf16.msra.mxu0 0
  %202 = vmatprep.mubr.bf16.mxu0 0
  %203 = vmatmul.mubr.bf16.gmra.mrb[0].mxu0 %v152
  %v204 = vpop.f32.mrb[0].mxu0
  %v205 = vadd.f32 %v42, %v204
  %v206 = vpop.f32.mrb[0].mxu0
  %v207 = vadd.f32 %v42, %v206
  %v208 = vpop.f32.mrb[0].mxu0
  %v209 = vadd.f32 %v47, %v208
  %v210 = vpop.f32.mrb[0].mxu0
  %v211 = vadd.f32 %v47, %v210
  %212 = vdwg.mxu0
  %213 = vmatprep.subr.bf16.mxu0 %v117
  %214 = vmatpush1.bf16.msra.mxu0 %v116
  %215 = vmatprep.subr.bf16.mxu0 %v121
  %216 = vmatpush1.bf16.msra.mxu0 %v120
  %217 = vmatprep.subr.bf16.mxu0 %v125
  %218 = vmatpush1.bf16.msra.mxu0 %v124
  %219 = vmatprep.subr.bf16.mxu0 %v129
  %220 = vmatpush1.bf16.msra.mxu0 %v128
  %221 = vmatprep.subr.bf16.mxu0 %v168
  %222 = vmatpush1.bf16.msra.mxu0 %v165
  %223 = vmatprep.subr.bf16.mxu0 0
  %224 = vmatpush1.bf16.msra.mxu0 0
  %225 = vmatprep.subr.bf16.mxu0 0
  %226 = vmatpush1.bf16.msra.mxu0 0
  %227 = vmatprep.subr.bf16.mxu0 0
  %228 = vmatpush1.bf16.msra.mxu0 0
  %229 = vmatprep.subr.bf16.mxu0 0
  %230 = vmatpush1.bf16.msra.mxu0 0
  %231 = vmatprep.subr.bf16.mxu0 0
  %232 = vmatpush1.bf16.msra.mxu0 0
  %233 = vmatprep.subr.bf16.mxu0 0
  %234 = vmatpush1.bf16.msra.mxu0 0
  %235 = vmatprep.subr.bf16.mxu0 0
  %236 = vmatpush1.bf16.msra.mxu0 0
  %237 = vmatprep.subr.bf16.mxu0 0
  %238 = vmatpush1.bf16.msra.mxu0 0
  %239 = vmatprep.subr.bf16.mxu0 0
  %240 = vmatpush1.bf16.msra.mxu0 0
  %241 = vmatprep.subr.bf16.mxu0 0
  %242 = vmatpush1.bf16.msra.mxu0 0
  %243 = vmatprep.subr.bf16.mxu0 0
  %244 = vmatpush1.bf16.msra.mxu0 0
  %245 = vmatprep.mubr.bf16.mxu0 0
  %246 = vmatmul.mubr.bf16.gmra.mrb[0].mxu0 %v152
  %v247 = vpop.f32.mrb[0].mxu0
  %v248 = vadd.f32 %v42, %v247
  %v249 = vpop.f32.mrb[0].mxu0
  %v250 = vadd.f32 %v42, %v249
  %v251 = vpop.f32.mrb[0].mxu0
  %v252 = vadd.f32 %v47, %v251
  %v253 = vpop.f32.mrb[0].mxu0
  %v254 = vadd.f32 %v47, %v253
  %255 = vdwg.mxu0
  %vm256 = vcmp.gt.f32.partialorder %v205, 0.0
  %vm257 = vcmp.gt.f32.partialorder %v207, 0.0
  %vm258 = vcmp.gt.f32.partialorder %v248, 0.0
  %vm259 = vcmp.gt.f32.partialorder %v250, 0.0
  %vm260 = vcmp.gt.f32.partialorder %v209, 0.0
  %vm261 = vcmp.gt.f32.partialorder %v211, 0.0
  %vm262 = vcmp.gt.f32.partialorder %v252, 0.0
  %vm263 = vcmp.gt.f32.partialorder %v254, 0.0
  %v264 = vmul.f32 %v205, 0.01
  %v265 = vmul.f32 %v207, 0.01
  %v266 = vmul.f32 %v248, 0.01
  %v267 = vmul.f32 %v250, 0.01
  %v268 = vmul.f32 %v209, 0.01
  %v269 = vmul.f32 %v211, 0.01
  %v270 = vmul.f32 %v252, 0.01
  %v271 = vmul.f32 %v254, 0.01
  %v272 = vsel %vm256, %v205, %v264
  %v273 = vsel %vm257, %v207, %v265
  %v274 = vsel %vm258, %v248, %v266
  %v275 = vsel %vm259, %v250, %v267
  %v276 = vsel %vm260, %v209, %v268
  %v277 = vsel %vm261, %v211, %v269
  %v278 = vsel %vm262, %v252, %v270
  %v279 = vsel %vm263, %v254, %v271
  %v280 = vpack.c.bf16 %v276, %v272
  %v281 = vpack.c.bf16 %v277, %v273
  %v282 = vpack.c.bf16 %v278, %v274
  %v283 = vpack.c.bf16 %v279, %v275
  %v288 = vunpack.c.l.b16 %v280
  %v289 = vunpack.c.l.b16 %v281
  %v290 = vunpack.c.l.b16 %v282
  %v291 = vunpack.c.l.b16 %v283
  %v292 = vunpack.c.h.b16 %v280
  %v293 = vunpack.c.h.b16 %v281
  %v294 = vunpack.c.h.b16 %v282
  %v295 = vunpack.c.h.b16 %v283
  %v296 = vpack.c.b16 %v289, %v288
  %v297 = vpack.c.b16 %v291, %v290
  %v298 = vpack.c.b16 %v293, %v292
  %v299 = vpack.c.b16 %v295, %v294
  %304 = vst [vmem:[%s3] sm:$0xff] %v296
  %305 = vst [vmem:[%s3 + $0x8] sm:$0xff] %v297
  %306 = vst [vmem:[%s3 + $0x10] sm:$0xff] %v298
  %307 = vst [vmem:[%s3 + $0x18] sm:$0xff] %v299
  // Predicated region
  $region14: #{encoder_svhn_forward.3} parent=0 // pred_check
    _
  $region15: #{encoder_svhn_forward.3} parent=0 // pred_check_branch
    %309 = sbr.rel (0) target = $region17
  $region16: #{encoder_svhn_forward.3} parent=0 // pred_region
    _
  $region17: #{encoder_svhn_forward.3} parent=0 // pred_fallthru
    _
  // Predicated region
  $region18: #{encoder_svhn_forward.3} parent=0 // pred_check
    _
  $region19: #{encoder_svhn_forward.3} parent=0 // pred_check_branch
    %311 = sbr.rel (0) target = $region21
  $region20: #{encoder_svhn_forward.3} parent=0 // pred_region
    _
  $region21: #{encoder_svhn_forward.3} parent=0 // pred_fallthru
    _

// kernel: encoder_svhn_forward.4
$region0: #{encoder_svhn_forward.4}
  #allocation0 [shape = 'u32[]', space=smem, size = 0x4, offset = 0x4, fixed_abs, tag = 'smem constant byte address 0x4 - core index']
  #allocation1 [shape = 'u32[144,128]{1,0:T(1,128)}', space=vmem, size = 0x12000, scoped, tag = 'internal scratch']
  %s0 = inlined_call_operand.vmem [shape: bf16[400,128], index: 0, kind: input, shape index: {}]
  %s1 = inlined_call_operand.vmem [shape: bf16[32,400], index: 1, kind: input, shape index: {}]
  %s2 = inlined_call_operand.vmem [shape: f32[32,1], index: 2, kind: input, shape index: {}]
  %s3 = inlined_call_operand.vmem [shape: bf16[32,128], index: 3, kind: output, shape index: {}]
  %s4 = sld [smem:[#allocation0]]
  $region22: #{encoder_svhn_forward.4} parent=0
    _
  %s6 = ssub.s32 1, %s4
  %s7 = scalar_select 0, %s6, %s4
  // Predicated region
  $region2: #{encoder_svhn_forward.4} parent=0 // pred_check
    _
  $region3: #{encoder_svhn_forward.4} parent=0 // pred_check_branch
    %9 = sbr.rel (0) target = $region5
  $region4: #{encoder_svhn_forward.4} parent=0 // pred_region
    _
  $region5: #{encoder_svhn_forward.4} parent=0 // pred_fallthru
    _
  // Predicated region
  $region6: #{encoder_svhn_forward.4} parent=0 // pred_check
    _
  $region7: #{encoder_svhn_forward.4} parent=0 // pred_check_branch
    %11 = sbr.rel (0) target = $region9
  $region8: #{encoder_svhn_forward.4} parent=0 // pred_region
    _
  $region9: #{encoder_svhn_forward.4} parent=0 // pred_fallthru
    _
  // Predicated region
  $region10: #{encoder_svhn_forward.4} parent=0 // pred_check
    _
  $region11: #{encoder_svhn_forward.4} parent=0 // pred_check_branch
    %13 = sbr.rel (0) target = $region13
  $region12: #{encoder_svhn_forward.4} parent=0 // pred_region
    _
  $region13: #{encoder_svhn_forward.4} parent=0 // pred_fallthru
    _
  %v15 = vld [vmem:[%s1] sm:$0xff]
  %v16 = vld [vmem:[%s1 + $0x8] sm:$0xff]
  %v17 = vld [vmem:[%s1 + $0x10] sm:$0xff]
  %v18 = vld [vmem:[%s1 + $0x18] sm:$0xff]
  %v19 = vld [vmem:[%s1 + $0x20] sm:$0xff]
  %v20 = vld [vmem:[%s1 + $0x28] sm:$0xff]
  %v21 = vld [vmem:[%s1 + $0x30] sm:$0xff]
  %v22 = vld [vmem:[%s1 + $0x38] sm:$0xff]
  %v23 = vld [vmem:[%s0] sm:$0xf]
  %v24 = vld [vmem:[%s0 + $0x4] sm:$0xf]
  %v25 = vld [vmem:[%s0 + $0x8] sm:$0xf]
  %v26 = vld [vmem:[%s0 + $0xc] sm:$0xf]
  %v27 = vld [vmem:[%s0 + $0x10] sm:$0xf]
  %v28 = vld [vmem:[%s0 + $0x14] sm:$0xf]
  %v29 = vld [vmem:[%s0 + $0x18] sm:$0xf]
  %v30 = vld [vmem:[%s0 + $0x1c] sm:$0xf]
  %v31 = vld [vmem:[%s0 + $0x20] sm:$0xf]
  %v32 = vld [vmem:[%s0 + $0x24] sm:$0xf]
  %v33 = vld [vmem:[%s0 + $0x28] sm:$0xf]
  %v34 = vld [vmem:[%s0 + $0x2c] sm:$0xf]
  %v35 = vld [vmem:[%s0 + $0x30] sm:$0xf]
  %v36 = vld [vmem:[%s0 + $0x34] sm:$0xf]
  %v37 = vld [vmem:[%s0 + $0x38] sm:$0xf]
  %v38 = vld [vmem:[%s0 + $0x3c] sm:$0xf]
  %v39 = vld [vmem:[%s0 + $0x40] sm:$0xf]
  %v40 = vld [vmem:[%s0 + $0x44] sm:$0xf]
  %v41 = vld [vmem:[%s0 + $0x48] sm:$0xf]
  %v42 = vld [vmem:[%s0 + $0x4c] sm:$0xf]
  %v43 = vld [vmem:[%s0 + $0x50] sm:$0xf]
  %v44 = vld [vmem:[%s0 + $0x54] sm:$0xf]
  %v45 = vld [vmem:[%s0 + $0x58] sm:$0xf]
  %v46 = vld [vmem:[%s0 + $0x5c] sm:$0xf]
  %v47 = vld [vmem:[%s0 + $0x60] sm:$0xf]
  %v48 = vld [vmem:[%s0 + $0x64] sm:$0xf]
  %v49 = vld [vmem:[%s0 + $0x68] sm:$0xf]
  %v50 = vld [vmem:[%s0 + $0x6c] sm:$0xf]
  %v51 = vld [vmem:[%s0 + $0x70] sm:$0xf]
  %v52 = vld [vmem:[%s0 + $0x74] sm:$0xf]
  %v53 = vld [vmem:[%s0 + $0x78] sm:$0xf]
  %v54 = vld [vmem:[%s0 + $0x7c] sm:$0xf]
  %v55 = vld [vmem:[%s0 + $0x80] sm:$0xf]
  %v56 = vld [vmem:[%s0 + $0x84] sm:$0xf]
  %v57 = vld [vmem:[%s0 + $0x88] sm:$0xf]
  %v58 = vld [vmem:[%s0 + $0x8c] sm:$0xf]
  %v59 = vld [vmem:[%s0 + $0x90] sm:$0xf]
  %v60 = vld [vmem:[%s0 + $0x94] sm:$0xf]
  %v61 = vld [vmem:[%s0 + $0x98] sm:$0xf]
  %v62 = vld [vmem:[%s0 + $0x9c] sm:$0xf]
  %v63 = vld [vmem:[%s0 + $0xa0] sm:$0xf]
  %v64 = vld [vmem:[%s0 + $0xa4] sm:$0xf]
  %v65 = vld [vmem:[%s0 + $0xa8] sm:$0xf]
  %v66 = vld [vmem:[%s0 + $0xac] sm:$0xf]
  %v67 = vld [vmem:[%s0 + $0xb0] sm:$0xf]
  %v68 = vld [vmem:[%s0 + $0xb4] sm:$0xf]
  %v69 = vld [vmem:[%s0 + $0xb8] sm:$0xf]
  %v70 = vld [vmem:[%s0 + $0xbc] sm:$0xf]
  %v71 = vld [vmem:[%s0 + $0xc0] sm:$0xf]
  %v72 = vld [vmem:[%s0 + $0xc4] sm:$0xf]
  %v73 = vld [vmem:[%s2] sm:$0xff]
  %v74 = vld [vmem:[%s2 + $0x8] sm:$0xff]
  %v75 = vld [vmem:[%s2 + $0x10] sm:$0xff]
  %v76 = vld [vmem:[%s2 + $0x18] sm:$0xff]
  %78 = vset.pattern.permute.xlu0 0
  %79 = vperm.xlu0 %78, %v73
  %v80 = vpop.permute.xlu0 %79
  %83 = vset.pattern.permute.xlu0 0
  %84 = vperm.xlu0 %83, %v74
  %v85 = vpop.permute.xlu0 %84
  %88 = vset.pattern.permute.xlu0 0
  %89 = vperm.xlu0 %88, %v75
  %v90 = vpop.permute.xlu0 %89
  %93 = vset.pattern.permute.xlu0 0
  %94 = vperm.xlu0 %93, %v76
  %v95 = vpop.permute.xlu0 %94
  %v105 = vunpack.c.l.b16 %v15
  %v106 = vunpack.c.h.b16 %v15
  %v107 = vunpack.c.l.b16 %v16
  %v108 = vunpack.c.h.b16 %v16
  %v109 = vunpack.c.l.b16 %v17
  %v110 = vunpack.c.h.b16 %v17
  %v111 = vunpack.c.l.b16 %v18
  %v112 = vunpack.c.h.b16 %v18
  %v113 = vunpack.c.l.b16 %v19
  %v114 = vunpack.c.h.b16 %v19
  %v115 = vunpack.c.l.b16 %v20
  %v116 = vunpack.c.h.b16 %v20
  %v117 = vunpack.c.l.b16 %v21
  %v118 = vunpack.c.h.b16 %v21
  %v119 = vunpack.c.l.b16 %v22
  %v120 = vunpack.c.h.b16 %v22
  %v121 = vpack.c.b16 %v109, %v105
  %v122 = vpack.c.b16 %v110, %v106
  %v123 = vpack.c.b16 %v111, %v107
  %v124 = vpack.c.b16 %v112, %v108
  %v125 = vpack.c.b16 %v117, %v113
  %v126 = vpack.c.b16 %v118, %v114
  %v127 = vpack.c.b16 %v119, %v115
  %v128 = vpack.c.b16 %v120, %v116
  %v185 = vunpack.c.l.b16 %v23
  %v186 = vunpack.c.l.b16 %v24
  %v187 = vunpack.c.l.b16 %v25
  %v188 = vunpack.c.l.b16 %v26
  %v189 = vunpack.c.l.b16 %v27
  %v190 = vunpack.c.l.b16 %v28
  %v191 = vunpack.c.l.b16 %v29
  %v192 = vunpack.c.l.b16 %v30
  %v193 = vunpack.c.l.b16 %v31
  %v194 = vunpack.c.l.b16 %v32
  %v195 = vunpack.c.l.b16 %v33
  %v196 = vunpack.c.l.b16 %v34
  %v197 = vunpack.c.l.b16 %v35
  %v198 = vunpack.c.l.b16 %v36
  %v199 = vunpack.c.l.b16 %v37
  %v200 = vunpack.c.l.b16 %v38
  %v201 = vunpack.c.l.b16 %v39
  %v202 = vunpack.c.l.b16 %v40
  %v203 = vunpack.c.l.b16 %v41
  %v204 = vunpack.c.l.b16 %v42
  %v205 = vunpack.c.l.b16 %v43
  %v206 = vunpack.c.l.b16 %v44
  %v207 = vunpack.c.l.b16 %v45
  %v208 = vunpack.c.l.b16 %v46
  %v209 = vunpack.c.l.b16 %v47
  %v210 = vunpack.c.l.b16 %v48
  %v211 = vunpack.c.l.b16 %v49
  %v212 = vunpack.c.l.b16 %v50
  %v213 = vunpack.c.l.b16 %v51
  %v214 = vunpack.c.l.b16 %v52
  %v215 = vunpack.c.l.b16 %v53
  %v216 = vunpack.c.l.b16 %v54
  %v217 = vunpack.c.l.b16 %v55
  %v218 = vunpack.c.l.b16 %v56
  %v219 = vunpack.c.l.b16 %v57
  %v220 = vunpack.c.l.b16 %v58
  %v221 = vunpack.c.l.b16 %v59
  %v222 = vunpack.c.l.b16 %v60
  %v223 = vunpack.c.l.b16 %v61
  %v224 = vunpack.c.l.b16 %v62
  %v225 = vunpack.c.l.b16 %v63
  %v226 = vunpack.c.l.b16 %v64
  %v227 = vunpack.c.l.b16 %v65
  %v228 = vunpack.c.l.b16 %v66
  %v229 = vunpack.c.l.b16 %v67
  %v230 = vunpack.c.l.b16 %v68
  %v231 = vunpack.c.l.b16 %v69
  %v232 = vunpack.c.l.b16 %v70
  %v233 = vunpack.c.l.b16 %v71
  %v234 = vunpack.c.l.b16 %v72
  %v235 = vpack.c.b16 %v186, %v185
  %v236 = vpack.c.b16 %v188, %v187
  %v237 = vpack.c.b16 %v190, %v189
  %v238 = vpack.c.b16 %v192, %v191
  %v239 = vpack.c.b16 %v194, %v193
  %v240 = vpack.c.b16 %v196, %v195
  %v241 = vpack.c.b16 %v198, %v197
  %v242 = vpack.c.b16 %v200, %v199
  %v243 = vpack.c.b16 %v202, %v201
  %v244 = vpack.c.b16 %v204, %v203
  %v245 = vpack.c.b16 %v206, %v205
  %v246 = vpack.c.b16 %v208, %v207
  %v247 = vpack.c.b16 %v210, %v209
  %v248 = vpack.c.b16 %v212, %v211
  %v249 = vpack.c.b16 %v214, %v213
  %v250 = vpack.c.b16 %v216, %v215
  %v251 = vpack.c.b16 %v218, %v217
  %v252 = vpack.c.b16 %v220, %v219
  %v253 = vpack.c.b16 %v222, %v221
  %v254 = vpack.c.b16 %v224, %v223
  %v255 = vpack.c.b16 %v226, %v225
  %v256 = vpack.c.b16 %v228, %v227
  %v257 = vpack.c.b16 %v230, %v229
  %v258 = vpack.c.b16 %v232, %v231
  %v259 = vpack.c.b16 %v234, %v233
  %vm285 = vcmask 130048
  %v287 = vsel %vm285, %v124, 0
  %v290 = vsel %vm285, %v128, 0
  %292 = vmatprep.subr.bf16.mxu0 0
  %293 = vmatpush1.bf16.msra.mxu0 %v235
  %294 = vmatprep.subr.bf16.mxu0 0
  %295 = vmatpush1.bf16.msra.mxu0 %v236
  %296 = vmatprep.subr.bf16.mxu0 0
  %297 = vmatpush1.bf16.msra.mxu0 %v237
  %298 = vmatprep.subr.bf16.mxu0 0
  %299 = vmatpush1.bf16.msra.mxu0 %v238
  %300 = vmatprep.subr.bf16.mxu0 0
  %301 = vmatpush1.bf16.msra.mxu0 %v239
  %302 = vmatprep.subr.bf16.mxu0 0
  %303 = vmatpush1.bf16.msra.mxu0 %v240
  %304 = vmatprep.subr.bf16.mxu0 0
  %305 = vmatpush1.bf16.msra.mxu0 %v241
  %306 = vmatprep.subr.bf16.mxu0 0
  %307 = vmatpush1.bf16.msra.mxu0 %v242
  %308 = vmatprep.subr.bf16.mxu0 0
  %309 = vmatpush1.bf16.msra.mxu0 %v243
  %310 = vmatprep.subr.bf16.mxu0 0
  %311 = vmatpush1.bf16.msra.mxu0 %v244
  %312 = vmatprep.subr.bf16.mxu0 0
  %313 = vmatpush1.bf16.msra.mxu0 %v245
  %314 = vmatprep.subr.bf16.mxu0 0
  %315 = vmatpush1.bf16.msra.mxu0 %v246
  %316 = vmatprep.subr.bf16.mxu0 0
  %317 = vmatpush1.bf16.msra.mxu0 %v247
  %318 = vmatprep.subr.bf16.mxu0 0
  %319 = vmatpush1.bf16.msra.mxu0 %v248
  %320 = vmatprep.subr.bf16.mxu0 0
  %321 = vmatpush1.bf16.msra.mxu0 %v249
  %322 = vmatprep.subr.bf16.mxu0 0
  %323 = vmatpush1.bf16.msra.mxu0 %v250
  %324 = vmatprep.mubr.bf16.mxu0 %v122
  %325 = vmatmul.mubr.bf16.gmra.mrb[0].mxu0 %v121
  %v326 = vpop.f32.mrb[0].mxu0
  %v327 = vadd.f32 %v80, %v326
  %v328 = vpop.f32.mrb[0].mxu0
  %v329 = vpop.f32.mrb[0].mxu0
  %v330 = vadd.f32 %v85, %v329
  %v331 = vpop.f32.mrb[0].mxu0
  %332 = vmatprep.mubr.bf16.mxu0 %v126
  %333 = vmatmul.mubr.bf16.gmra.mrb[0].mxu0 %v125
  %v334 = vpop.f32.mrb[0].mxu0
  %v335 = vadd.f32 %v90, %v334
  %v336 = vpop.f32.mrb[0].mxu0
  %v337 = vpop.f32.mrb[0].mxu0
  %v338 = vadd.f32 %v95, %v337
  %v339 = vpop.f32.mrb[0].mxu0
  %340 = vdwg.mxu0
  %341 = vmatprep.subr.bf16.mxu0 0
  %342 = vmatpush1.bf16.msra.mxu0 %v251
  %343 = vmatprep.subr.bf16.mxu0 0
  %344 = vmatpush1.bf16.msra.mxu0 %v252
  %345 = vmatprep.subr.bf16.mxu0 0
  %346 = vmatpush1.bf16.msra.mxu0 %v253
  %347 = vmatprep.subr.bf16.mxu0 0
  %348 = vmatpush1.bf16.msra.mxu0 %v254
  %349 = vmatprep.subr.bf16.mxu0 0
  %350 = vmatpush1.bf16.msra.mxu0 %v255
  %351 = vmatprep.subr.bf16.mxu0 0
  %352 = vmatpush1.bf16.msra.mxu0 %v256
  %353 = vmatprep.subr.bf16.mxu0 0
  %354 = vmatpush1.bf16.msra.mxu0 %v257
  %355 = vmatprep.subr.bf16.mxu0 0
  %356 = vmatpush1.bf16.msra.mxu0 %v258
  %357 = vmatprep.subr.bf16.mxu0 0
  %358 = vmatpush1.bf16.msra.mxu0 %v259
  %359 = vmatprep.subr.bf16.mxu0 0
  %360 = vmatpush1.bf16.msra.mxu0 0
  %361 = vmatprep.subr.bf16.mxu0 0
  %362 = vmatpush1.bf16.msra.mxu0 0
  %363 = vmatprep.subr.bf16.mxu0 0
  %364 = vmatpush1.bf16.msra.mxu0 0
  %365 = vmatprep.subr.bf16.mxu0 0
  %366 = vmatpush1.bf16.msra.mxu0 0
  %367 = vmatprep.subr.bf16.mxu0 0
  %368 = vmatpush1.bf16.msra.mxu0 0
  %369 = vmatprep.subr.bf16.mxu0 0
  %370 = vmatpush1.bf16.msra.mxu0 0
  %371 = vmatprep.subr.bf16.mxu0 0
  %372 = vmatpush1.bf16.msra.mxu0 0
  %373 = vmatprep.mubr.bf16.mxu0 %v287
  %374 = vmatmul.mubr.bf16.gmra.mrb[0].mxu0 %v123
  %v375 = vpop.f32.mrb[0].mxu0
  %v376 = vadd.f32 %v327, %v375
  %v377 = vpop.f32.mrb[0].mxu0
  %v378 = vpop.f32.mrb[0].mxu0
  %v379 = vadd.f32 %v330, %v378
  %v380 = vpop.f32.mrb[0].mxu0
  %381 = vmatprep.mubr.bf16.mxu0 %v290
  %382 = vmatmul.mubr.bf16.gmra.mrb[0].mxu0 %v127
  %v383 = vpop.f32.mrb[0].mxu0
  %v384 = vadd.f32 %v335, %v383
  %v385 = vpop.f32.mrb[0].mxu0
  %v386 = vpop.f32.mrb[0].mxu0
  %v387 = vadd.f32 %v338, %v386
  %v388 = vpop.f32.mrb[0].mxu0
  %389 = vdwg.mxu0
  %vm390 = vcmp.gt.f32.partialorder %v376, 0.0
  %vm391 = vcmp.gt.f32.partialorder %v379, 0.0
  %vm392 = vcmp.gt.f32.partialorder %v384, 0.0
  %vm393 = vcmp.gt.f32.partialorder %v387, 0.0
  %v394 = vmul.f32 %v376, 0.01
  %v395 = vmul.f32 %v379, 0.01
  %v396 = vmul.f32 %v384, 0.01
  %v397 = vmul.f32 %v387, 0.01
  %v398 = vsel %vm390, %v376, %v394
  %v399 = vsel %vm391, %v379, %v395
  %v400 = vsel %vm392, %v384, %v396
  %v401 = vsel %vm393, %v387, %v397
  %v402 = vpack.c.bf16 %v399, %v398
  %v403 = vpack.c.bf16 %v401, %v400
  %v406 = vunpack.c.l.b16 %v402
  %v407 = vunpack.c.h.b16 %v402
  %v408 = vunpack.c.l.b16 %v403
  %v409 = vunpack.c.h.b16 %v403
  %v410 = vpack.c.b16 %v406, %v406
  %v411 = vpack.c.b16 %v407, %v407
  %v412 = vpack.c.b16 %v408, %v408
  %v413 = vpack.c.b16 %v409, %v409
  %418 = vst [vmem:[%s3] sm:$0xf] %v410
  %419 = vst [vmem:[%s3 + $0x4] sm:$0xf] %v411
  %420 = vst [vmem:[%s3 + $0x8] sm:$0xf] %v412
  %421 = vst [vmem:[%s3 + $0xc] sm:$0xf] %v413
  // Predicated region
  $region14: #{encoder_svhn_forward.4} parent=0 // pred_check
    _
  $region15: #{encoder_svhn_forward.4} parent=0 // pred_check_branch
    %423 = sbr.rel (0) target = $region17
  $region16: #{encoder_svhn_forward.4} parent=0 // pred_region
    _
  $region17: #{encoder_svhn_forward.4} parent=0 // pred_fallthru
    _
  // Predicated region
  $region18: #{encoder_svhn_forward.4} parent=0 // pred_check
    _
  $region19: #{encoder_svhn_forward.4} parent=0 // pred_check_branch
    %425 = sbr.rel (0) target = $region21
  $region20: #{encoder_svhn_forward.4} parent=0 // pred_region
    _
  $region21: #{encoder_svhn_forward.4} parent=0 // pred_fallthru
    _

// kernel: encoder_svhn_forward.5
$region0: #{encoder_svhn_forward.5}
  #allocation0 [shape = 'u32[]', space=smem, size = 0x4, offset = 0x4, fixed_abs, tag = 'smem constant byte address 0x4 - core index']
  #allocation1 [shape = 'u32[144,128]{1,0:T(1,128)}', space=vmem, size = 0x12000, scoped, tag = 'internal scratch']
  %s0 = inlined_call_operand.vmem [shape: bf16[800,32], index: 0, kind: input, shape index: {}]
  %s1 = inlined_call_operand.vmem [shape: bf16[64,800], index: 1, kind: input, shape index: {}]
  %s2 = inlined_call_operand.vmem [shape: f32[64,1], index: 2, kind: input, shape index: {}]
  %s3 = inlined_call_operand.vmem [shape: f32[8,64,16], index: 3, kind: input, shape index: {}]
  %s4 = inlined_call_operand.vmem [shape: f32[8,1], index: 4, kind: input, shape index: {}]
  %s5 = inlined_call_operand.vmem [shape: f32[8,2], index: 5, kind: input, shape index: {}]
  %s6 = inlined_call_operand.vmem [shape: f32[8,2], index: 6, kind: output, shape index: {}]
  %s7 = sld [smem:[#allocation0]]
  $region34: #{encoder_svhn_forward.5} parent=0
    _
  %s9 = ssub.s32 1, %s7
  %s10 = scalar_select 0, %s9, %s7
  // Predicated region
  $region2: #{encoder_svhn_forward.5} parent=0 // pred_check
    _
  $region3: #{encoder_svhn_forward.5} parent=0 // pred_check_branch
    %12 = sbr.rel (0) target = $region5
  $region4: #{encoder_svhn_forward.5} parent=0 // pred_region
    _
  $region5: #{encoder_svhn_forward.5} parent=0 // pred_fallthru
    _
  // Predicated region
  $region6: #{encoder_svhn_forward.5} parent=0 // pred_check
    _
  $region7: #{encoder_svhn_forward.5} parent=0 // pred_check_branch
    %14 = sbr.rel (0) target = $region9
  $region8: #{encoder_svhn_forward.5} parent=0 // pred_region
    _
  $region9: #{encoder_svhn_forward.5} parent=0 // pred_fallthru
    _
  // Predicated region
  $region10: #{encoder_svhn_forward.5} parent=0 // pred_check
    _
  $region11: #{encoder_svhn_forward.5} parent=0 // pred_check_branch
    %16 = sbr.rel (0) target = $region13
  $region12: #{encoder_svhn_forward.5} parent=0 // pred_region
    _
  $region13: #{encoder_svhn_forward.5} parent=0 // pred_fallthru
    _
  // Predicated region
  $region14: #{encoder_svhn_forward.5} parent=0 // pred_check
    _
  $region15: #{encoder_svhn_forward.5} parent=0 // pred_check_branch
    %18 = sbr.rel (0) target = $region17
  $region16: #{encoder_svhn_forward.5} parent=0 // pred_region
    _
  $region17: #{encoder_svhn_forward.5} parent=0 // pred_fallthru
    _
  // Predicated region
  $region18: #{encoder_svhn_forward.5} parent=0 // pred_check
    _
  $region19: #{encoder_svhn_forward.5} parent=0 // pred_check_branch
    %20 = sbr.rel (0) target = $region21
  $region20: #{encoder_svhn_forward.5} parent=0 // pred_region
    _
  $region21: #{encoder_svhn_forward.5} parent=0 // pred_fallthru
    _
  // Predicated region
  $region22: #{encoder_svhn_forward.5} parent=0 // pred_check
    _
  $region23: #{encoder_svhn_forward.5} parent=0 // pred_check_branch
    %22 = sbr.rel (0) target = $region25
  $region24: #{encoder_svhn_forward.5} parent=0 // pred_region
    _
  $region25: #{encoder_svhn_forward.5} parent=0 // pred_fallthru
    _
  %v24 = vld [vmem:[%s1] sm:$0xff]
  %v25 = vld [vmem:[%s1 + $0x8] sm:$0xff]
  %v26 = vld [vmem:[%s1 + $0x10] sm:$0xff]
  %v27 = vld [vmem:[%s1 + $0x18] sm:$0xf]
  %v28 = vld [vmem:[%s1 + $0x1c] sm:$0xff]
  %v29 = vld [vmem:[%s1 + $0x24] sm:$0xff]
  %v30 = vld [vmem:[%s1 + $0x2c] sm:$0xff]
  %v31 = vld [vmem:[%s1 + $0x34] sm:$0xf]
  %v32 = vld [vmem:[%s1 + $0x38] sm:$0xff]
  %v33 = vld [vmem:[%s1 + $0x40] sm:$0xff]
  %v34 = vld [vmem:[%s1 + $0x48] sm:$0xff]
  %v35 = vld [vmem:[%s1 + $0x50] sm:$0xf]
  %v36 = vld [vmem:[%s1 + $0x54] sm:$0xff]
  %v37 = vld [vmem:[%s1 + $0x5c] sm:$0xff]
  %v38 = vld [vmem:[%s1 + $0x64] sm:$0xff]
  %v39 = vld [vmem:[%s1 + $0x6c] sm:$0xf]
  %v40 = vld [vmem:[%s1 + $0x70] sm:$0xff]
  %v41 = vld [vmem:[%s1 + $0x78] sm:$0xff]
  %v42 = vld [vmem:[%s1 + $0x80] sm:$0xff]
  %v43 = vld [vmem:[%s1 + $0x88] sm:$0xf]
  %v44 = vld [vmem:[%s1 + $0x8c] sm:$0xff]
  %v45 = vld [vmem:[%s1 + $0x94] sm:$0xff]
  %v46 = vld [vmem:[%s1 + $0x9c] sm:$0xff]
  %v47 = vld [vmem:[%s1 + $0xa4] sm:$0xf]
  %v48 = vld [vmem:[%s1 + $0xa8] sm:$0xff]
  %v49 = vld [vmem:[%s1 + $0xb0] sm:$0xff]
  %v50 = vld [vmem:[%s1 + $0xb8] sm:$0xff]
  %v51 = vld [vmem:[%s1 + $0xc0] sm:$0xf]
  %v52 = vld [vmem:[%s1 + $0xc4] sm:$0xff]
  %v53 = vld [vmem:[%s1 + $0xcc] sm:$0xff]
  %v54 = vld [vmem:[%s1 + $0xd4] sm:$0xff]
  %v55 = vld [vmem:[%s1 + $0xdc] sm:$0xf]
  %v56 = vld [vmem:[%s0] sm:$0xf]
  %v57 = vld [vmem:[%s0 + $0x4] sm:$0xf]
  %v58 = vld [vmem:[%s0 + $0x8] sm:$0xf]
  %v59 = vld [vmem:[%s0 + $0xc] sm:$0xf]
  %v60 = vld [vmem:[%s0 + $0x10] sm:$0xf]
  %v61 = vld [vmem:[%s0 + $0x14] sm:$0xf]
  %v62 = vld [vmem:[%s0 + $0x18] sm:$0xf]
  %v63 = vld [vmem:[%s0 + $0x1c] sm:$0xf]
  %v64 = vld [vmem:[%s0 + $0x20] sm:$0xf]
  %v65 = vld [vmem:[%s0 + $0x24] sm:$0xf]
  %v66 = vld [vmem:[%s0 + $0x28] sm:$0xf]
  %v67 = vld [vmem:[%s0 + $0x2c] sm:$0xf]
  %v68 = vld [vmem:[%s0 + $0x30] sm:$0xf]
  %v69 = vld [vmem:[%s0 + $0x34] sm:$0xf]
  %v70 = vld [vmem:[%s0 + $0x38] sm:$0xf]
  %v71 = vld [vmem:[%s0 + $0x3c] sm:$0xf]
  %v72 = vld [vmem:[%s0 + $0x40] sm:$0xf]
  %v73 = vld [vmem:[%s0 + $0x44] sm:$0xf]
  %v74 = vld [vmem:[%s0 + $0x48] sm:$0xf]
  %v75 = vld [vmem:[%s0 + $0x4c] sm:$0xf]
  %v76 = vld [vmem:[%s0 + $0x50] sm:$0xf]
  %v77 = vld [vmem:[%s0 + $0x54] sm:$0xf]
  %v78 = vld [vmem:[%s0 + $0x58] sm:$0xf]
  %v79 = vld [vmem:[%s0 + $0x5c] sm:$0xf]
  %v80 = vld [vmem:[%s0 + $0x60] sm:$0xf]
  %v81 = vld [vmem:[%s0 + $0x64] sm:$0xf]
  %v82 = vld [vmem:[%s0 + $0x68] sm:$0xf]
  %v83 = vld [vmem:[%s0 + $0x6c] sm:$0xf]
  %v84 = vld [vmem:[%s0 + $0x70] sm:$0xf]
  %v85 = vld [vmem:[%s0 + $0x74] sm:$0xf]
  %v86 = vld [vmem:[%s0 + $0x78] sm:$0xf]
  %v87 = vld [vmem:[%s0 + $0x7c] sm:$0xf]
  %v88 = vld [vmem:[%s0 + $0x80] sm:$0xf]
  %v89 = vld [vmem:[%s0 + $0x84] sm:$0xf]
  %v90 = vld [vmem:[%s0 + $0x88] sm:$0xf]
  %v91 = vld [vmem:[%s0 + $0x8c] sm:$0xf]
  %v92 = vld [vmem:[%s0 + $0x90] sm:$0xf]
  %v93 = vld [vmem:[%s0 + $0x94] sm:$0xf]
  %v94 = vld [vmem:[%s0 + $0x98] sm:$0xf]
  %v95 = vld [vmem:[%s0 + $0x9c] sm:$0xf]
  %v96 = vld [vmem:[%s0 + $0xa0] sm:$0xf]
  %v97 = vld [vmem:[%s0 + $0xa4] sm:$0xf]
  %v98 = vld [vmem:[%s0 + $0xa8] sm:$0xf]
  %v99 = vld [vmem:[%s0 + $0xac] sm:$0xf]
  %v100 = vld [vmem:[%s0 + $0xb0] sm:$0xf]
  %v101 = vld [vmem:[%s0 + $0xb4] sm:$0xf]
  %v102 = vld [vmem:[%s0 + $0xb8] sm:$0xf]
  %v103 = vld [vmem:[%s0 + $0xbc] sm:$0xf]
  %v104 = vld [vmem:[%s0 + $0xc0] sm:$0xf]
  %v105 = vld [vmem:[%s0 + $0xc4] sm:$0xf]
  %v106 = vld [vmem:[%s0 + $0xc8] sm:$0xf]
  %v107 = vld [vmem:[%s0 + $0xcc] sm:$0xf]
  %v108 = vld [vmem:[%s0 + $0xd0] sm:$0xf]
  %v109 = vld [vmem:[%s0 + $0xd4] sm:$0xf]
  %v110 = vld [vmem:[%s0 + $0xd8] sm:$0xf]
  %v111 = vld [vmem:[%s0 + $0xdc] sm:$0xf]
  %v112 = vld [vmem:[%s0 + $0xe0] sm:$0xf]
  %v113 = vld [vmem:[%s0 + $0xe4] sm:$0xf]
  %v114 = vld [vmem:[%s0 + $0xe8] sm:$0xf]
  %v115 = vld [vmem:[%s0 + $0xec] sm:$0xf]
  %v116 = vld [vmem:[%s0 + $0xf0] sm:$0xf]
  %v117 = vld [vmem:[%s0 + $0xf4] sm:$0xf]
  %v118 = vld [vmem:[%s0 + $0xf8] sm:$0xf]
  %v119 = vld [vmem:[%s0 + $0xfc] sm:$0xf]
  %v120 = vld [vmem:[%s0 + $0x100] sm:$0xf]
  %v121 = vld [vmem:[%s0 + $0x104] sm:$0xf]
  %v122 = vld [vmem:[%s0 + $0x108] sm:$0xf]
  %v123 = vld [vmem:[%s0 + $0x10c] sm:$0xf]
  %v124 = vld [vmem:[%s0 + $0x110] sm:$0xf]
  %v125 = vld [vmem:[%s0 + $0x114] sm:$0xf]
  %v126 = vld [vmem:[%s0 + $0x118] sm:$0xf]
  %v127 = vld [vmem:[%s0 + $0x11c] sm:$0xf]
  %v128 = vld [vmem:[%s0 + $0x120] sm:$0xf]
  %v129 = vld [vmem:[%s0 + $0x124] sm:$0xf]
  %v130 = vld [vmem:[%s0 + $0x128] sm:$0xf]
  %v131 = vld [vmem:[%s0 + $0x12c] sm:$0xf]
  %v132 = vld [vmem:[%s0 + $0x130] sm:$0xf]
  %v133 = vld [vmem:[%s0 + $0x134] sm:$0xf]
  %v134 = vld [vmem:[%s0 + $0x138] sm:$0xf]
  %v135 = vld [vmem:[%s0 + $0x13c] sm:$0xf]
  %v136 = vld [vmem:[%s0 + $0x140] sm:$0xf]
  %v137 = vld [vmem:[%s0 + $0x144] sm:$0xf]
  %v138 = vld [vmem:[%s0 + $0x148] sm:$0xf]
  %v139 = vld [vmem:[%s0 + $0x14c] sm:$0xf]
  %v140 = vld [vmem:[%s0 + $0x150] sm:$0xf]
  %v141 = vld [vmem:[%s0 + $0x154] sm:$0xf]
  %v142 = vld [vmem:[%s0 + $0x158] sm:$0xf]
  %v143 = vld [vmem:[%s0 + $0x15c] sm:$0xf]
  %v144 = vld [vmem:[%s0 + $0x160] sm:$0xf]
  %v145 = vld [vmem:[%s0 + $0x164] sm:$0xf]
  %v146 = vld [vmem:[%s0 + $0x168] sm:$0xf]
  %v147 = vld [vmem:[%s0 + $0x16c] sm:$0xf]
  %v148 = vld [vmem:[%s0 + $0x170] sm:$0xf]
  %v149 = vld [vmem:[%s0 + $0x174] sm:$0xf]
  %v150 = vld [vmem:[%s0 + $0x178] sm:$0xf]
  %v151 = vld [vmem:[%s0 + $0x17c] sm:$0xf]
  %v152 = vld [vmem:[%s0 + $0x180] sm:$0xf]
  %v153 = vld [vmem:[%s0 + $0x184] sm:$0xf]
  %v154 = vld [vmem:[%s0 + $0x188] sm:$0xf]
  %v155 = vld [vmem:[%s0 + $0x18c] sm:$0xf]
  %v156 = vld [vmem:[%s2] sm:$0xff]
  %v157 = vld [vmem:[%s2 + $0x8] sm:$0xff]
  %v158 = vld [vmem:[%s2 + $0x10] sm:$0xff]
  %v159 = vld [vmem:[%s2 + $0x18] sm:$0xff]
  %v160 = vld [vmem:[%s2 + $0x20] sm:$0xff]
  %v161 = vld [vmem:[%s2 + $0x28] sm:$0xff]
  %v162 = vld [vmem:[%s2 + $0x30] sm:$0xff]
  %v163 = vld [vmem:[%s2 + $0x38] sm:$0xff]
  %165 = vset.pattern.permute.xlu0 0
  %166 = vperm.xlu0 %165, %v156
  %v167 = vpop.permute.xlu0 %166
  %170 = vset.pattern.permute.xlu0 0
  %171 = vperm.xlu0 %170, %v157
  %v172 = vpop.permute.xlu0 %171
  %175 = vset.pattern.permute.xlu0 0
  %176 = vperm.xlu0 %175, %v158
  %v177 = vpop.permute.xlu0 %176
  %180 = vset.pattern.permute.xlu0 0
  %181 = vperm.xlu0 %180, %v159
  %v182 = vpop.permute.xlu0 %181
  %185 = vset.pattern.permute.xlu0 0
  %186 = vperm.xlu0 %185, %v160
  %v187 = vpop.permute.xlu0 %186
  %190 = vset.pattern.permute.xlu0 0
  %191 = vperm.xlu0 %190, %v161
  %v192 = vpop.permute.xlu0 %191
  %195 = vset.pattern.permute.xlu0 0
  %196 = vperm.xlu0 %195, %v162
  %v197 = vpop.permute.xlu0 %196
  %200 = vset.pattern.permute.xlu0 0
  %201 = vperm.xlu0 %200, %v163
  %v202 = vpop.permute.xlu0 %201
  %v236 = vunpack.c.l.b16 %v24
  %v237 = vunpack.c.h.b16 %v24
  %v238 = vunpack.c.l.b16 %v25
  %v239 = vunpack.c.h.b16 %v25
  %v240 = vunpack.c.l.b16 %v26
  %v241 = vunpack.c.h.b16 %v26
  %v242 = vunpack.c.l.b16 %v27
  %v243 = vunpack.c.l.b16 %v28
  %v244 = vunpack.c.h.b16 %v28
  %v245 = vunpack.c.l.b16 %v29
  %v246 = vunpack.c.h.b16 %v29
  %v247 = vunpack.c.l.b16 %v30
  %v248 = vunpack.c.h.b16 %v30
  %v249 = vunpack.c.l.b16 %v31
  %v250 = vunpack.c.l.b16 %v32
  %v251 = vunpack.c.h.b16 %v32
  %v252 = vunpack.c.l.b16 %v33
  %v253 = vunpack.c.h.b16 %v33
  %v254 = vunpack.c.l.b16 %v34
  %v255 = vunpack.c.h.b16 %v34
  %v256 = vunpack.c.l.b16 %v35
  %v257 = vunpack.c.l.b16 %v36
  %v258 = vunpack.c.h.b16 %v36
  %v259 = vunpack.c.l.b16 %v37
  %v260 = vunpack.c.h.b16 %v37
  %v261 = vunpack.c.l.b16 %v38
  %v262 = vunpack.c.h.b16 %v38
  %v263 = vunpack.c.l.b16 %v39
  %v264 = vunpack.c.l.b16 %v40
  %v265 = vunpack.c.h.b16 %v40
  %v266 = vunpack.c.l.b16 %v41
  %v267 = vunpack.c.h.b16 %v41
  %v268 = vunpack.c.l.b16 %v42
  %v269 = vunpack.c.h.b16 %v42
  %v270 = vunpack.c.l.b16 %v43
  %v271 = vunpack.c.l.b16 %v44
  %v272 = vunpack.c.h.b16 %v44
  %v273 = vunpack.c.l.b16 %v45
  %v274 = vunpack.c.h.b16 %v45
  %v275 = vunpack.c.l.b16 %v46
  %v276 = vunpack.c.h.b16 %v46
  %v277 = vunpack.c.l.b16 %v47
  %v278 = vunpack.c.l.b16 %v48
  %v279 = vunpack.c.h.b16 %v48
  %v280 = vunpack.c.l.b16 %v49
  %v281 = vunpack.c.h.b16 %v49
  %v282 = vunpack.c.l.b16 %v50
  %v283 = vunpack.c.h.b16 %v50
  %v284 = vunpack.c.l.b16 %v51
  %v285 = vunpack.c.l.b16 %v52
  %v286 = vunpack.c.h.b16 %v52
  %v287 = vunpack.c.l.b16 %v53
  %v288 = vunpack.c.h.b16 %v53
  %v289 = vunpack.c.l.b16 %v54
  %v290 = vunpack.c.h.b16 %v54
  %v291 = vunpack.c.l.b16 %v55
  %v292 = vpack.c.b16 %v243, %v236
  %v293 = vpack.c.b16 %v244, %v237
  %v294 = vpack.c.b16 %v245, %v238
  %v295 = vpack.c.b16 %v246, %v239
  %v296 = vpack.c.b16 %v247, %v240
  %v297 = vpack.c.b16 %v248, %v241
  %v298 = vpack.c.b16 %v249, %v242
  %v299 = vpack.c.b16 %v257, %v250
  %v300 = vpack.c.b16 %v258, %v251
  %v301 = vpack.c.b16 %v259, %v252
  %v302 = vpack.c.b16 %v260, %v253
  %v303 = vpack.c.b16 %v261, %v254
  %v304 = vpack.c.b16 %v262, %v255
  %v305 = vpack.c.b16 %v263, %v256
  %v306 = vpack.c.b16 %v271, %v264
  %v307 = vpack.c.b16 %v272, %v265
  %v308 = vpack.c.b16 %v273, %v266
  %v309 = vpack.c.b16 %v274, %v267
  %v310 = vpack.c.b16 %v275, %v268
  %v311 = vpack.c.b16 %v276, %v269
  %v312 = vpack.c.b16 %v277, %v270
  %v313 = vpack.c.b16 %v285, %v278
  %v314 = vpack.c.b16 %v286, %v279
  %v315 = vpack.c.b16 %v287, %v280
  %v316 = vpack.c.b16 %v288, %v281
  %v317 = vpack.c.b16 %v289, %v282
  %v318 = vpack.c.b16 %v290, %v283
  %v319 = vpack.c.b16 %v291, %v284
  %v444 = vunpack.c.l.b16 %v56
  %v445 = vunpack.c.l.b16 %v57
  %v446 = vunpack.c.l.b16 %v58
  %v447 = vunpack.c.l.b16 %v59
  %v448 = vunpack.c.l.b16 %v60
  %v449 = vunpack.c.l.b16 %v61
  %v450 = vunpack.c.l.b16 %v62
  %v451 = vunpack.c.l.b16 %v63
  %v452 = vunpack.c.l.b16 %v64
  %v453 = vunpack.c.l.b16 %v65
  %v454 = vunpack.c.l.b16 %v66
  %v455 = vunpack.c.l.b16 %v67
  %v456 = vunpack.c.l.b16 %v68
  %v457 = vunpack.c.l.b16 %v69
  %v458 = vunpack.c.l.b16 %v70
  %v459 = vunpack.c.l.b16 %v71
  %v460 = vunpack.c.l.b16 %v72
  %v461 = vunpack.c.l.b16 %v73
  %v462 = vunpack.c.l.b16 %v74
  %v463 = vunpack.c.l.b16 %v75
  %v464 = vunpack.c.l.b16 %v76
  %v465 = vunpack.c.l.b16 %v77
  %v466 = vunpack.c.l.b16 %v78
  %v467 = vunpack.c.l.b16 %v79
  %v468 = vunpack.c.l.b16 %v80
  %v469 = vunpack.c.l.b16 %v81
  %v470 = vunpack.c.l.b16 %v82
  %v471 = vunpack.c.l.b16 %v83
  %v472 = vunpack.c.l.b16 %v84
  %v473 = vunpack.c.l.b16 %v85
  %v474 = vunpack.c.l.b16 %v86
  %v475 = vunpack.c.l.b16 %v87
  %v476 = vunpack.c.l.b16 %v88
  %v477 = vunpack.c.l.b16 %v89
  %v478 = vunpack.c.l.b16 %v90
  %v479 = vunpack.c.l.b16 %v91
  %v480 = vunpack.c.l.b16 %v92
  %v481 = vunpack.c.l.b16 %v93
  %v482 = vunpack.c.l.b16 %v94
  %v483 = vunpack.c.l.b16 %v95
  %v484 = vunpack.c.l.b16 %v96
  %v485 = vunpack.c.l.b16 %v97
  %v486 = vunpack.c.l.b16 %v98
  %v487 = vunpack.c.l.b16 %v99
  %v488 = vunpack.c.l.b16 %v100
  %v489 = vunpack.c.l.b16 %v101
  %v490 = vunpack.c.l.b16 %v102
  %v491 = vunpack.c.l.b16 %v103
  %v492 = vunpack.c.l.b16 %v104
  %v493 = vunpack.c.l.b16 %v105
  %v494 = vunpack.c.l.b16 %v106
  %v495 = vunpack.c.l.b16 %v107
  %v496 = vunpack.c.l.b16 %v108
  %v497 = vunpack.c.l.b16 %v109
  %v498 = vunpack.c.l.b16 %v110
  %v499 = vunpack.c.l.b16 %v111
  %v500 = vunpack.c.l.b16 %v112
  %v501 = vunpack.c.l.b16 %v113
  %v502 = vunpack.c.l.b16 %v114
  %v503 = vunpack.c.l.b16 %v115
  %v504 = vunpack.c.l.b16 %v116
  %v505 = vunpack.c.l.b16 %v117
  %v506 = vunpack.c.l.b16 %v118
  %v507 = vunpack.c.l.b16 %v119
  %v508 = vunpack.c.l.b16 %v120
  %v509 = vunpack.c.l.b16 %v121
  %v510 = vunpack.c.l.b16 %v122
  %v511 = vunpack.c.l.b16 %v123
  %v512 = vunpack.c.l.b16 %v124
  %v513 = vunpack.c.l.b16 %v125
  %v514 = vunpack.c.l.b16 %v126
  %v515 = vunpack.c.l.b16 %v127
  %v516 = vunpack.c.l.b16 %v128
  %v517 = vunpack.c.l.b16 %v129
  %v518 = vunpack.c.l.b16 %v130
  %v519 = vunpack.c.l.b16 %v131
  %v520 = vunpack.c.l.b16 %v132
  %v521 = vunpack.c.l.b16 %v133
  %v522 = vunpack.c.l.b16 %v134
  %v523 = vunpack.c.l.b16 %v135
  %v524 = vunpack.c.l.b16 %v136
  %v525 = vunpack.c.l.b16 %v137
  %v526 = vunpack.c.l.b16 %v138
  %v527 = vunpack.c.l.b16 %v139
  %v528 = vunpack.c.l.b16 %v140
  %v529 = vunpack.c.l.b16 %v141
  %v530 = vunpack.c.l.b16 %v142
  %v531 = vunpack.c.l.b16 %v143
  %v532 = vunpack.c.l.b16 %v144
  %v533 = vunpack.c.l.b16 %v145
  %v534 = vunpack.c.l.b16 %v146
  %v535 = vunpack.c.l.b16 %v147
  %v536 = vunpack.c.l.b16 %v148
  %v537 = vunpack.c.l.b16 %v149
  %v538 = vunpack.c.l.b16 %v150
  %v539 = vunpack.c.l.b16 %v151
  %v540 = vunpack.c.l.b16 %v152
  %v541 = vunpack.c.l.b16 %v153
  %v542 = vunpack.c.l.b16 %v154
  %v543 = vunpack.c.l.b16 %v155
  %v544 = vpack.c.b16 %v445, %v444
  %v545 = vpack.c.b16 %v447, %v446
  %v546 = vpack.c.b16 %v449, %v448
  %v547 = vpack.c.b16 %v451, %v450
  %v548 = vpack.c.b16 %v453, %v452
  %v549 = vpack.c.b16 %v455, %v454
  %v550 = vpack.c.b16 %v457, %v456
  %v551 = vpack.c.b16 %v459, %v458
  %v552 = vpack.c.b16 %v461, %v460
  %v553 = vpack.c.b16 %v463, %v462
  %v554 = vpack.c.b16 %v465, %v464
  %v555 = vpack.c.b16 %v467, %v466
  %v556 = vpack.c.b16 %v469, %v468
  %v557 = vpack.c.b16 %v471, %v470
  %v558 = vpack.c.b16 %v473, %v472
  %v559 = vpack.c.b16 %v475, %v474
  %v560 = vpack.c.b16 %v477, %v476
  %v561 = vpack.c.b16 %v479, %v478
  %v562 = vpack.c.b16 %v481, %v480
  %v563 = vpack.c.b16 %v483, %v482
  %v564 = vpack.c.b16 %v485, %v484
  %v565 = vpack.c.b16 %v487, %v486
  %v566 = vpack.c.b16 %v489, %v488
  %v567 = vpack.c.b16 %v491, %v490
  %v568 = vpack.c.b16 %v493, %v492
  %v569 = vpack.c.b16 %v495, %v494
  %v570 = vpack.c.b16 %v497, %v496
  %v571 = vpack.c.b16 %v499, %v498
  %v572 = vpack.c.b16 %v501, %v500
  %v573 = vpack.c.b16 %v503, %v502
  %v574 = vpack.c.b16 %v505, %v504
  %v575 = vpack.c.b16 %v507, %v506
  %v576 = vpack.c.b16 %v509, %v508
  %v577 = vpack.c.b16 %v511, %v510
  %v578 = vpack.c.b16 %v513, %v512
  %v579 = vpack.c.b16 %v515, %v514
  %v580 = vpack.c.b16 %v517, %v516
  %v581 = vpack.c.b16 %v519, %v518
  %v582 = vpack.c.b16 %v521, %v520
  %v583 = vpack.c.b16 %v523, %v522
  %v584 = vpack.c.b16 %v525, %v524
  %v585 = vpack.c.b16 %v527, %v526
  %v586 = vpack.c.b16 %v529, %v528
  %v587 = vpack.c.b16 %v531, %v530
  %v588 = vpack.c.b16 %v533, %v532
  %v589 = vpack.c.b16 %v535, %v534
  %v590 = vpack.c.b16 %v537, %v536
  %v591 = vpack.c.b16 %v539, %v538
  %v592 = vpack.c.b16 %v541, %v540
  %v593 = vpack.c.b16 %v543, %v542
  %vm644 = vcmask 261120
  %v646 = vsel %vm644, %v298, 0
  %v649 = vsel %vm644, %v305, 0
  %v652 = vsel %vm644, %v312, 0
  %v655 = vsel %vm644, %v319, 0
  %657 = vmatprep.subr.bf16.mxu0 0
  %658 = vmatpush1.bf16.msra.mxu0 %v544
  %659 = vmatprep.subr.bf16.mxu0 0
  %660 = vmatpush1.bf16.msra.mxu0 %v545
  %661 = vmatprep.subr.bf16.mxu0 0
  %662 = vmatpush1.bf16.msra.mxu0 %v546
  %663 = vmatprep.subr.bf16.mxu0 0
  %664 = vmatpush1.bf16.msra.mxu0 %v547
  %665 = vmatprep.subr.bf16.mxu0 0
  %666 = vmatpush1.bf16.msra.mxu0 %v548
  %667 = vmatprep.subr.bf16.mxu0 0
  %668 = vmatpush1.bf16.msra.mxu0 %v549
  %669 = vmatprep.subr.bf16.mxu0 0
  %670 = vmatpush1.bf16.msra.mxu0 %v550
  %671 = vmatprep.subr.bf16.mxu0 0
  %672 = vmatpush1.bf16.msra.mxu0 %v551
  %673 = vmatprep.subr.bf16.mxu0 0
  %674 = vmatpush1.bf16.msra.mxu0 %v552
  %675 = vmatprep.subr.bf16.mxu0 0
  %676 = vmatpush1.bf16.msra.mxu0 %v553
  %677 = vmatprep.subr.bf16.mxu0 0
  %678 = vmatpush1.bf16.msra.mxu0 %v554
  %679 = vmatprep.subr.bf16.mxu0 0
  %680 = vmatpush1.bf16.msra.mxu0 %v555
  %681 = vmatprep.subr.bf16.mxu0 0
  %682 = vmatpush1.bf16.msra.mxu0 %v556
  %683 = vmatprep.subr.bf16.mxu0 0
  %684 = vmatpush1.bf16.msra.mxu0 %v557
  %685 = vmatprep.subr.bf16.mxu0 0
  %686 = vmatpush1.bf16.msra.mxu0 %v558
  %687 = vmatprep.subr.bf16.mxu0 0
  %688 = vmatpush1.bf16.msra.mxu0 %v559
  %689 = vmatprep.mubr.bf16.mxu0 %v293
  %690 = vmatmul.mubr.bf16.gmra.mrb[0].mxu0 %v292
  %v691 = vpop.f32.mrb[0].mxu0
  %v692 = vadd.f32 %v167, %v691
  %v693 = vpop.f32.mrb[0].mxu0
  %v694 = vpop.f32.mrb[0].mxu0
  %v695 = vadd.f32 %v172, %v694
  %v696 = vpop.f32.mrb[0].mxu0
  %697 = vmatprep.mubr.bf16.mxu0 %v300
  %698 = vmatmul.mubr.bf16.gmra.mrb[0].mxu0 %v299
  %v699 = vpop.f32.mrb[0].mxu0
  %v700 = vadd.f32 %v177, %v699
  %v701 = vpop.f32.mrb[0].mxu0
  %v702 = vpop.f32.mrb[0].mxu0
  %v703 = vadd.f32 %v182, %v702
  %v704 = vpop.f32.mrb[0].mxu0
  %705 = vmatprep.mubr.bf16.mxu0 %v307
  %706 = vmatmul.mubr.bf16.gmra.mrb[0].mxu0 %v306
  %v707 = vpop.f32.mrb[0].mxu0
  %v708 = vadd.f32 %v187, %v707
  %v709 = vpop.f32.mrb[0].mxu0
  %v710 = vpop.f32.mrb[0].mxu0
  %v711 = vadd.f32 %v192, %v710
  %v712 = vpop.f32.mrb[0].mxu0
  %713 = vmatprep.mubr.bf16.mxu0 %v314
  %714 = vmatmul.mubr.bf16.gmra.mrb[0].mxu0 %v313
  %v715 = vpop.f32.mrb[0].mxu0
  %v716 = vadd.f32 %v197, %v715
  %v717 = vpop.f32.mrb[0].mxu0
  %v718 = vpop.f32.mrb[0].mxu0
  %v719 = vadd.f32 %v202, %v718
  %v720 = vpop.f32.mrb[0].mxu0
  %721 = vdwg.mxu0
  %722 = vmatprep.subr.bf16.mxu0 0
  %723 = vmatpush1.bf16.msra.mxu0 %v560
  %724 = vmatprep.subr.bf16.mxu0 0
  %725 = vmatpush1.bf16.msra.mxu0 %v561
  %726 = vmatprep.subr.bf16.mxu0 0
  %727 = vmatpush1.bf16.msra.mxu0 %v562
  %728 = vmatprep.subr.bf16.mxu0 0
  %729 = vmatpush1.bf16.msra.mxu0 %v563
  %730 = vmatprep.subr.bf16.mxu0 0
  %731 = vmatpush1.bf16.msra.mxu0 %v564
  %732 = vmatprep.subr.bf16.mxu0 0
  %733 = vmatpush1.bf16.msra.mxu0 %v565
  %734 = vmatprep.subr.bf16.mxu0 0
  %735 = vmatpush1.bf16.msra.mxu0 %v566
  %736 = vmatprep.subr.bf16.mxu0 0
  %737 = vmatpush1.bf16.msra.mxu0 %v567
  %738 = vmatprep.subr.bf16.mxu0 0
  %739 = vmatpush1.bf16.msra.mxu0 %v568
  %740 = vmatprep.subr.bf16.mxu0 0
  %741 = vmatpush1.bf16.msra.mxu0 %v569
  %742 = vmatprep.subr.bf16.mxu0 0
  %743 = vmatpush1.bf16.msra.mxu0 %v570
  %744 = vmatprep.subr.bf16.mxu0 0
  %745 = vmatpush1.bf16.msra.mxu0 %v571
  %746 = vmatprep.subr.bf16.mxu0 0
  %747 = vmatpush1.bf16.msra.mxu0 %v572
  %748 = vmatprep.subr.bf16.mxu0 0
  %749 = vmatpush1.bf16.msra.mxu0 %v573
  %750 = vmatprep.subr.bf16.mxu0 0
  %751 = vmatpush1.bf16.msra.mxu0 %v574
  %752 = vmatprep.subr.bf16.mxu0 0
  %753 = vmatpush1.bf16.msra.mxu0 %v575
  %754 = vmatprep.mubr.bf16.mxu0 %v295
  %755 = vmatmul.mubr.bf16.gmra.mrb[0].mxu0 %v294
  %v756 = vpop.f32.mrb[0].mxu0
  %v757 = vadd.f32 %v692, %v756
  %v758 = vpop.f32.mrb[0].mxu0
  %v759 = vpop.f32.mrb[0].mxu0
  %v760 = vadd.f32 %v695, %v759
  %v761 = vpop.f32.mrb[0].mxu0
  %762 = vmatprep.mubr.bf16.mxu0 %v302
  %763 = vmatmul.mubr.bf16.gmra.mrb[0].mxu0 %v301
  %v764 = vpop.f32.mrb[0].mxu0
  %v765 = vadd.f32 %v700, %v764
  %v766 = vpop.f32.mrb[0].mxu0
  %v767 = vpop.f32.mrb[0].mxu0
  %v768 = vadd.f32 %v703, %v767
  %v769 = vpop.f32.mrb[0].mxu0
  %770 = vmatprep.mubr.bf16.mxu0 %v309
  %771 = vmatmul.mubr.bf16.gmra.mrb[0].mxu0 %v308
  %v772 = vpop.f32.mrb[0].mxu0
  %v773 = vadd.f32 %v708, %v772
  %v774 = vpop.f32.mrb[0].mxu0
  %v775 = vpop.f32.mrb[0].mxu0
  %v776 = vadd.f32 %v711, %v775
  %v777 = vpop.f32.mrb[0].mxu0
  %778 = vmatprep.mubr.bf16.mxu0 %v316
  %779 = vmatmul.mubr.bf16.gmra.mrb[0].mxu0 %v315
  %v780 = vpop.f32.mrb[0].mxu0
  %v781 = vadd.f32 %v716, %v780
  %v782 = vpop.f32.mrb[0].mxu0
  %v783 = vpop.f32.mrb[0].mxu0
  %v784 = vadd.f32 %v719, %v783
  %v785 = vpop.f32.mrb[0].mxu0
  %786 = vdwg.mxu0
  %787 = vmatprep.subr.bf16.mxu0 0
  %788 = vmatpush1.bf16.msra.mxu0 %v576
  %789 = vmatprep.subr.bf16.mxu0 0
  %790 = vmatpush1.bf16.msra.mxu0 %v577
  %791 = vmatprep.subr.bf16.mxu0 0
  %792 = vmatpush1.bf16.msra.mxu0 %v578
  %793 = vmatprep.subr.bf16.mxu0 0
  %794 = vmatpush1.bf16.msra.mxu0 %v579
  %795 = vmatprep.subr.bf16.mxu0 0
  %796 = vmatpush1.bf16.msra.mxu0 %v580
  %797 = vmatprep.subr.bf16.mxu0 0
  %798 = vmatpush1.bf16.msra.mxu0 %v581
  %799 = vmatprep.subr.bf16.mxu0 0
  %800 = vmatpush1.bf16.msra.mxu0 %v582
  %801 = vmatprep.subr.bf16.mxu0 0
  %802 = vmatpush1.bf16.msra.mxu0 %v583
  %803 = vmatprep.subr.bf16.mxu0 0
  %804 = vmatpush1.bf16.msra.mxu0 %v584
  %805 = vmatprep.subr.bf16.mxu0 0
  %806 = vmatpush1.bf16.msra.mxu0 %v585
  %807 = vmatprep.subr.bf16.mxu0 0
  %808 = vmatpush1.bf16.msra.mxu0 %v586
  %809 = vmatprep.subr.bf16.mxu0 0
  %810 = vmatpush1.bf16.msra.mxu0 %v587
  %811 = vmatprep.subr.bf16.mxu0 0
  %812 = vmatpush1.bf16.msra.mxu0 %v588
  %813 = vmatprep.subr.bf16.mxu0 0
  %814 = vmatpush1.bf16.msra.mxu0 %v589
  %815 = vmatprep.subr.bf16.mxu0 0
  %816 = vmatpush1.bf16.msra.mxu0 %v590
  %817 = vmatprep.subr.bf16.mxu0 0
  %818 = vmatpush1.bf16.msra.mxu0 %v591
  %819 = vmatprep.mubr.bf16.mxu0 %v297
  %820 = vmatmul.mubr.bf16.gmra.mrb[0].mxu0 %v296
  %v821 = vpop.f32.mrb[0].mxu0
  %v822 = vadd.f32 %v757, %v821
  %v823 = vpop.f32.mrb[0].mxu0
  %v824 = vpop.f32.mrb[0].mxu0
  %v825 = vadd.f32 %v760, %v824
  %v826 = vpop.f32.mrb[0].mxu0
  %827 = vmatprep.mubr.bf16.mxu0 %v304
  %828 = vmatmul.mubr.bf16.gmra.mrb[0].mxu0 %v303
  %v829 = vpop.f32.mrb[0].mxu0
  %v830 = vadd.f32 %v765, %v829
  %v831 = vpop.f32.mrb[0].mxu0
  %v832 = vpop.f32.mrb[0].mxu0
  %v833 = vadd.f32 %v768, %v832
  %v834 = vpop.f32.mrb[0].mxu0
  %835 = vmatprep.mubr.bf16.mxu0 %v311
  %836 = vmatmul.mubr.bf16.gmra.mrb[0].mxu0 %v310
  %v837 = vpop.f32.mrb[0].mxu0
  %v838 = vadd.f32 %v773, %v837
  %v839 = vpop.f32.mrb[0].mxu0
  %v840 = vpop.f32.mrb[0].mxu0
  %v841 = vadd.f32 %v776, %v840
  %v842 = vpop.f32.mrb[0].mxu0
  %843 = vmatprep.mubr.bf16.mxu0 %v318
  %844 = vmatmul.mubr.bf16.gmra.mrb[0].mxu0 %v317
  %v845 = vpop.f32.mrb[0].mxu0
  %v846 = vadd.f32 %v781, %v845
  %v847 = vpop.f32.mrb[0].mxu0
  %v848 = vpop.f32.mrb[0].mxu0
  %v849 = vadd.f32 %v784, %v848
  %v850 = vpop.f32.mrb[0].mxu0
  %851 = vdwg.mxu0
  %852 = vmatprep.subr.bf16.mxu0 0
  %853 = vmatpush1.bf16.msra.mxu0 %v592
  %854 = vmatprep.subr.bf16.mxu0 0
  %855 = vmatpush1.bf16.msra.mxu0 %v593
  %856 = vmatprep.subr.bf16.mxu0 0
  %857 = vmatpush1.bf16.msra.mxu0 0
  %858 = vmatprep.subr.bf16.mxu0 0
  %859 = vmatpush1.bf16.msra.mxu0 0
  %860 = vmatprep.subr.bf16.mxu0 0
  %861 = vmatpush1.bf16.msra.mxu0 0
  %862 = vmatprep.subr.bf16.mxu0 0
  %863 = vmatpush1.bf16.msra.mxu0 0
  %864 = vmatprep.subr.bf16.mxu0 0
  %865 = vmatpush1.bf16.msra.mxu0 0
  %866 = vmatprep.subr.bf16.mxu0 0
  %867 = vmatpush1.bf16.msra.mxu0 0
  %868 = vmatprep.subr.bf16.mxu0 0
  %869 = vmatpush1.bf16.msra.mxu0 0
  %870 = vmatprep.subr.bf16.mxu0 0
  %871 = vmatpush1.bf16.msra.mxu0 0
  %872 = vmatprep.subr.bf16.mxu0 0
  %873 = vmatpush1.bf16.msra.mxu0 0
  %874 = vmatprep.subr.bf16.mxu0 0
  %875 = vmatpush1.bf16.msra.mxu0 0
  %876 = vmatprep.subr.bf16.mxu0 0
  %877 = vmatpush1.bf16.msra.mxu0 0
  %878 = vmatprep.subr.bf16.mxu0 0
  %879 = vmatpush1.bf16.msra.mxu0 0
  %880 = vmatprep.subr.bf16.mxu0 0
  %881 = vmatpush1.bf16.msra.mxu0 0
  %882 = vmatprep.subr.bf16.mxu0 0
  %883 = vmatpush1.bf16.msra.mxu0 0
  %884 = vmatprep.mubr.bf16.mxu0 0
  %885 = vmatmul.mubr.bf16.gmra.mrb[0].mxu0 %v646
  %v886 = vpop.f32.mrb[0].mxu0
  %v887 = vadd.f32 %v822, %v886
  %v888 = vpop.f32.mrb[0].mxu0
  %v889 = vpop.f32.mrb[0].mxu0
  %v890 = vadd.f32 %v825, %v889
  %v891 = vpop.f32.mrb[0].mxu0
  %892 = vmatprep.mubr.bf16.mxu0 0
  %893 = vmatmul.mubr.bf16.gmra.mrb[0].mxu0 %v649
  %v894 = vpop.f32.mrb[0].mxu0
  %v895 = vadd.f32 %v830, %v894
  %v896 = vpop.f32.mrb[0].mxu0
  %v897 = vpop.f32.mrb[0].mxu0
  %v898 = vadd.f32 %v833, %v897
  %v899 = vpop.f32.mrb[0].mxu0
  %900 = vmatprep.mubr.bf16.mxu0 0
  %901 = vmatmul.mubr.bf16.gmra.mrb[0].mxu0 %v652
  %v902 = vpop.f32.mrb[0].mxu0
  %v903 = vadd.f32 %v838, %v902
  %v904 = vpop.f32.mrb[0].mxu0
  %v905 = vpop.f32.mrb[0].mxu0
  %v906 = vadd.f32 %v841, %v905
  %v907 = vpop.f32.mrb[0].mxu0
  %908 = vmatprep.mubr.bf16.mxu0 0
  %909 = vmatmul.mubr.bf16.gmra.mrb[0].mxu0 %v655
  %v910 = vpop.f32.mrb[0].mxu0
  %v911 = vadd.f32 %v846, %v910
  %v912 = vpop.f32.mrb[0].mxu0
  %v913 = vpop.f32.mrb[0].mxu0
  %v914 = vadd.f32 %v849, %v913
  %v915 = vpop.f32.mrb[0].mxu0
  %916 = vdwg.mxu0
  %vm917 = vcmp.gt.f32.partialorder %v887, 0.0
  %vm918 = vcmp.gt.f32.partialorder %v890, 0.0
  %vm919 = vcmp.gt.f32.partialorder %v895, 0.0
  %vm920 = vcmp.gt.f32.partialorder %v898, 0.0
  %vm921 = vcmp.gt.f32.partialorder %v903, 0.0
  %vm922 = vcmp.gt.f32.partialorder %v906, 0.0
  %vm923 = vcmp.gt.f32.partialorder %v911, 0.0
  %vm924 = vcmp.gt.f32.partialorder %v914, 0.0
  %v925 = vmul.f32 %v887, 0.01
  %v926 = vmul.f32 %v890, 0.01
  %v927 = vmul.f32 %v895, 0.01
  %v928 = vmul.f32 %v898, 0.01
  %v929 = vmul.f32 %v903, 0.01
  %v930 = vmul.f32 %v906, 0.01
  %v931 = vmul.f32 %v911, 0.01
  %v932 = vmul.f32 %v914, 0.01
  %v933 = vsel %vm917, %v887, %v925
  %v934 = vsel %vm918, %v890, %v926
  %v935 = vsel %vm919, %v895, %v927
  %v936 = vsel %vm920, %v898, %v928
  %v937 = vsel %vm921, %v903, %v929
  %v938 = vsel %vm922, %v906, %v930
  %v939 = vsel %vm923, %v911, %v931
  %v940 = vsel %vm924, %v914, %v932
  %v941 = vld [vmem:[%s3] sm:$0xff]
  %v942 = vld [vmem:[%s3 + $0x8] sm:$0xff]
  %v943 = vld [vmem:[%s3 + $0x10] sm:$0xff]
  %v944 = vld [vmem:[%s3 + $0x18] sm:$0xff]
  %v945 = vld [vmem:[%s3 + $0x20] sm:$0xff]
  %v946 = vld [vmem:[%s3 + $0x28] sm:$0xff]
  %v947 = vld [vmem:[%s3 + $0x30] sm:$0xff]
  %v948 = vld [vmem:[%s3 + $0x38] sm:$0xff]
  %v949 = vld [vmem:[%s3 + $0x40] sm:$0xff]
  %v950 = vld [vmem:[%s3 + $0x48] sm:$0xff]
  %v951 = vld [vmem:[%s3 + $0x50] sm:$0xff]
  %v952 = vld [vmem:[%s3 + $0x58] sm:$0xff]
  %v953 = vld [vmem:[%s3 + $0x60] sm:$0xff]
  %v954 = vld [vmem:[%s3 + $0x68] sm:$0xff]
  %v955 = vld [vmem:[%s3 + $0x70] sm:$0xff]
  %v956 = vld [vmem:[%s3 + $0x78] sm:$0xff]
  %v957 = vld [vmem:[%s3 + $0x80] sm:$0xff]
  %v958 = vld [vmem:[%s3 + $0x88] sm:$0xff]
  %v959 = vld [vmem:[%s3 + $0x90] sm:$0xff]
  %v960 = vld [vmem:[%s3 + $0x98] sm:$0xff]
  %v961 = vld [vmem:[%s3 + $0xa0] sm:$0xff]
  %v962 = vld [vmem:[%s3 + $0xa8] sm:$0xff]
  %v963 = vld [vmem:[%s3 + $0xb0] sm:$0xff]
  %v964 = vld [vmem:[%s3 + $0xb8] sm:$0xff]
  %v965 = vld [vmem:[%s3 + $0xc0] sm:$0xff]
  %v966 = vld [vmem:[%s3 + $0xc8] sm:$0xff]
  %v967 = vld [vmem:[%s3 + $0xd0] sm:$0xff]
  %v968 = vld [vmem:[%s3 + $0xd8] sm:$0xff]
  %v969 = vld [vmem:[%s3 + $0xe0] sm:$0xff]
  %v970 = vld [vmem:[%s3 + $0xe8] sm:$0xff]
  %v971 = vld [vmem:[%s3 + $0xf0] sm:$0xff]
  %v972 = vld [vmem:[%s3 + $0xf8] sm:$0xff]
  %v973 = vld [vmem:[%s3 + $0x100] sm:$0xff]
  %v974 = vld [vmem:[%s3 + $0x108] sm:$0xff]
  %v975 = vld [vmem:[%s3 + $0x110] sm:$0xff]
  %v976 = vld [vmem:[%s3 + $0x118] sm:$0xff]
  %v977 = vld [vmem:[%s3 + $0x120] sm:$0xff]
  %v978 = vld [vmem:[%s3 + $0x128] sm:$0xff]
  %v979 = vld [vmem:[%s3 + $0x130] sm:$0xff]
  %v980 = vld [vmem:[%s3 + $0x138] sm:$0xff]
  %v981 = vld [vmem:[%s3 + $0x140] sm:$0xff]
  %v982 = vld [vmem:[%s3 + $0x148] sm:$0xff]
  %v983 = vld [vmem:[%s3 + $0x150] sm:$0xff]
  %v984 = vld [vmem:[%s3 + $0x158] sm:$0xff]
  %v985 = vld [vmem:[%s3 + $0x160] sm:$0xff]
  %v986 = vld [vmem:[%s3 + $0x168] sm:$0xff]
  %v987 = vld [vmem:[%s3 + $0x170] sm:$0xff]
  %v988 = vld [vmem:[%s3 + $0x178] sm:$0xff]
  %v989 = vld [vmem:[%s3 + $0x180] sm:$0xff]
  %v990 = vld [vmem:[%s3 + $0x188] sm:$0xff]
  %v991 = vld [vmem:[%s3 + $0x190] sm:$0xff]
  %v992 = vld [vmem:[%s3 + $0x198] sm:$0xff]
  %v993 = vld [vmem:[%s3 + $0x1a0] sm:$0xff]
  %v994 = vld [vmem:[%s3 + $0x1a8] sm:$0xff]
  %v995 = vld [vmem:[%s3 + $0x1b0] sm:$0xff]
  %v996 = vld [vmem:[%s3 + $0x1b8] sm:$0xff]
  %v997 = vld [vmem:[%s3 + $0x1c0] sm:$0xff]
  %v998 = vld [vmem:[%s3 + $0x1c8] sm:$0xff]
  %v999 = vld [vmem:[%s3 + $0x1d0] sm:$0xff]
  %v1000 = vld [vmem:[%s3 + $0x1d8] sm:$0xff]
  %v1001 = vld [vmem:[%s3 + $0x1e0] sm:$0xff]
  %v1002 = vld [vmem:[%s3 + $0x1e8] sm:$0xff]
  %v1003 = vld [vmem:[%s3 + $0x1f0] sm:$0xff]
  %v1004 = vld [vmem:[%s3 + $0x1f8] sm:$0xff]
  %v1005 = vmul.f32 %v941, %v933
  %v1006 = vmul.f32 %v942, %v934
  %v1007 = vmul.f32 %v943, %v935
  %v1008 = vmul.f32 %v944, %v936
  %v1009 = vmul.f32 %v945, %v937
  %v1010 = vmul.f32 %v946, %v938
  %v1011 = vmul.f32 %v947, %v939
  %v1012 = vmul.f32 %v948, %v940
  %v1013 = vmul.f32 %v949, %v933
  %v1014 = vmul.f32 %v950, %v934
  %v1015 = vmul.f32 %v951, %v935
  %v1016 = vmul.f32 %v952, %v936
  %v1017 = vmul.f32 %v953, %v937
  %v1018 = vmul.f32 %v954, %v938
  %v1019 = vmul.f32 %v955, %v939
  %v1020 = vmul.f32 %v956, %v940
  %v1021 = vmul.f32 %v957, %v933
  %v1022 = vmul.f32 %v958, %v934
  %v1023 = vmul.f32 %v959, %v935
  %v1024 = vmul.f32 %v960, %v936
  %v1025 = vmul.f32 %v961, %v937
  %v1026 = vmul.f32 %v962, %v938
  %v1027 = vmul.f32 %v963, %v939
  %v1028 = vmul.f32 %v964, %v940
  %v1029 = vmul.f32 %v965, %v933
  %v1030 = vmul.f32 %v966, %v934
  %v1031 = vmul.f32 %v967, %v935
  %v1032 = vmul.f32 %v968, %v936
  %v1033 = vmul.f32 %v969, %v937
  %v1034 = vmul.f32 %v970, %v938
  %v1035 = vmul.f32 %v971, %v939
  %v1036 = vmul.f32 %v972, %v940
  %v1037 = vmul.f32 %v973, %v933
  %v1038 = vmul.f32 %v974, %v934
  %v1039 = vmul.f32 %v975, %v935
  %v1040 = vmul.f32 %v976, %v936
  %v1041 = vmul.f32 %v977, %v937
  %v1042 = vmul.f32 %v978, %v938
  %v1043 = vmul.f32 %v979, %v939
  %v1044 = vmul.f32 %v980, %v940
  %v1045 = vmul.f32 %v981, %v933
  %v1046 = vmul.f32 %v982, %v934
  %v1047 = vmul.f32 %v983, %v935
  %v1048 = vmul.f32 %v984, %v936
  %v1049 = vmul.f32 %v985, %v937
  %v1050 = vmul.f32 %v986, %v938
  %v1051 = vmul.f32 %v987, %v939
  %v1052 = vmul.f32 %v988, %v940
  %v1053 = vmul.f32 %v989, %v933
  %v1054 = vmul.f32 %v990, %v934
  %v1055 = vmul.f32 %v991, %v935
  %v1056 = vmul.f32 %v992, %v936
  %v1057 = vmul.f32 %v993, %v937
  %v1058 = vmul.f32 %v994, %v938
  %v1059 = vmul.f32 %v995, %v939
  %v1060 = vmul.f32 %v996, %v940
  %v1061 = vmul.f32 %v997, %v933
  %v1062 = vmul.f32 %v998, %v934
  %v1063 = vmul.f32 %v999, %v935
  %v1064 = vmul.f32 %v1000, %v936
  %v1065 = vmul.f32 %v1001, %v937
  %v1066 = vmul.f32 %v1002, %v938
  %v1067 = vmul.f32 %v1003, %v939
  %v1068 = vmul.f32 %v1004, %v940
  %vm1069 = vcmask 130048
  %v1070 = vsel %vm1069, %v1005, 0.0
  %1071 = vadd.xlane.f32.xlu0 %v1070
  %v1072 = vpop.xlane.xlu0 %1071
  %v1073 = vsel %vm1069, %v1006, 0.0
  %1074 = vadd.xlane.f32.xlu0 %v1073
  %v1075 = vpop.xlane.xlu0 %1074
  %v1076 = vsel %vm1069, %v1007, 0.0
  %1077 = vadd.xlane.f32.xlu0 %v1076
  %v1078 = vpop.xlane.xlu0 %1077
  %v1079 = vsel %vm1069, %v1008, 0.0
  %1080 = vadd.xlane.f32.xlu0 %v1079
  %v1081 = vpop.xlane.xlu0 %1080
  %v1082 = vsel %vm1069, %v1009, 0.0
  %1083 = vadd.xlane.f32.xlu0 %v1082
  %v1084 = vpop.xlane.xlu0 %1083
  %v1085 = vsel %vm1069, %v1010, 0.0
  %1086 = vadd.xlane.f32.xlu0 %v1085
  %v1087 = vpop.xlane.xlu0 %1086
  %v1088 = vsel %vm1069, %v1011, 0.0
  %1089 = vadd.xlane.f32.xlu0 %v1088
  %v1090 = vpop.xlane.xlu0 %1089
  %v1091 = vsel %vm1069, %v1012, 0.0
  %1092 = vadd.xlane.f32.xlu0 %v1091
  %v1093 = vpop.xlane.xlu0 %1092
  %v1094 = vsel %vm1069, %v1013, 0.0
  %1095 = vadd.xlane.f32.xlu0 %v1094
  %v1096 = vpop.xlane.xlu0 %1095
  %v1097 = vsel %vm1069, %v1014, 0.0
  %1098 = vadd.xlane.f32.xlu0 %v1097
  %v1099 = vpop.xlane.xlu0 %1098
  %v1100 = vsel %vm1069, %v1015, 0.0
  %1101 = vadd.xlane.f32.xlu0 %v1100
  %v1102 = vpop.xlane.xlu0 %1101
  %v1103 = vsel %vm1069, %v1016, 0.0
  %1104 = vadd.xlane.f32.xlu0 %v1103
  %v1105 = vpop.xlane.xlu0 %1104
  %v1106 = vsel %vm1069, %v1017, 0.0
  %1107 = vadd.xlane.f32.xlu0 %v1106
  %v1108 = vpop.xlane.xlu0 %1107
  %v1109 = vsel %vm1069, %v1018, 0.0
  %1110 = vadd.xlane.f32.xlu0 %v1109
  %v1111 = vpop.xlane.xlu0 %1110
  %v1112 = vsel %vm1069, %v1019, 0.0
  %1113 = vadd.xlane.f32.xlu0 %v1112
  %v1114 = vpop.xlane.xlu0 %1113
  %v1115 = vsel %vm1069, %v1020, 0.0
  %1116 = vadd.xlane.f32.xlu0 %v1115
  %v1117 = vpop.xlane.xlu0 %1116
  %v1118 = vsel %vm1069, %v1021, 0.0
  %1119 = vadd.xlane.f32.xlu0 %v1118
  %v1120 = vpop.xlane.xlu0 %1119
  %v1121 = vsel %vm1069, %v1022, 0.0
  %1122 = vadd.xlane.f32.xlu0 %v1121
  %v1123 = vpop.xlane.xlu0 %1122
  %v1124 = vsel %vm1069, %v1023, 0.0
  %1125 = vadd.xlane.f32.xlu0 %v1124
  %v1126 = vpop.xlane.xlu0 %1125
  %v1127 = vsel %vm1069, %v1024, 0.0
  %1128 = vadd.xlane.f32.xlu0 %v1127
  %v1129 = vpop.xlane.xlu0 %1128
  %v1130 = vsel %vm1069, %v1025, 0.0
  %1131 = vadd.xlane.f32.xlu0 %v1130
  %v1132 = vpop.xlane.xlu0 %1131
  %v1133 = vsel %vm1069, %v1026, 0.0
  %1134 = vadd.xlane.f32.xlu0 %v1133
  %v1135 = vpop.xlane.xlu0 %1134
  %v1136 = vsel %vm1069, %v1027, 0.0
  %1137 = vadd.xlane.f32.xlu0 %v1136
  %v1138 = vpop.xlane.xlu0 %1137
  %v1139 = vsel %vm1069, %v1028, 0.0
  %1140 = vadd.xlane.f32.xlu0 %v1139
  %v1141 = vpop.xlane.xlu0 %1140
  %v1142 = vsel %vm1069, %v1029, 0.0
  %1143 = vadd.xlane.f32.xlu0 %v1142
  %v1144 = vpop.xlane.xlu0 %1143
  %v1145 = vsel %vm1069, %v1030, 0.0
  %1146 = vadd.xlane.f32.xlu0 %v1145
  %v1147 = vpop.xlane.xlu0 %1146
  %v1148 = vsel %vm1069, %v1031, 0.0
  %1149 = vadd.xlane.f32.xlu0 %v1148
  %v1150 = vpop.xlane.xlu0 %1149
  %v1151 = vsel %vm1069, %v1032, 0.0
  %1152 = vadd.xlane.f32.xlu0 %v1151
  %v1153 = vpop.xlane.xlu0 %1152
  %v1154 = vsel %vm1069, %v1033, 0.0
  %1155 = vadd.xlane.f32.xlu0 %v1154
  %v1156 = vpop.xlane.xlu0 %1155
  %v1157 = vsel %vm1069, %v1034, 0.0
  %1158 = vadd.xlane.f32.xlu0 %v1157
  %v1159 = vpop.xlane.xlu0 %1158
  %v1160 = vsel %vm1069, %v1035, 0.0
  %1161 = vadd.xlane.f32.xlu0 %v1160
  %v1162 = vpop.xlane.xlu0 %1161
  %v1163 = vsel %vm1069, %v1036, 0.0
  %1164 = vadd.xlane.f32.xlu0 %v1163
  %v1165 = vpop.xlane.xlu0 %1164
  %v1166 = vsel %vm1069, %v1037, 0.0
  %1167 = vadd.xlane.f32.xlu0 %v1166
  %v1168 = vpop.xlane.xlu0 %1167
  %v1169 = vsel %vm1069, %v1038, 0.0
  %1170 = vadd.xlane.f32.xlu0 %v1169
  %v1171 = vpop.xlane.xlu0 %1170
  %v1172 = vsel %vm1069, %v1039, 0.0
  %1173 = vadd.xlane.f32.xlu0 %v1172
  %v1174 = vpop.xlane.xlu0 %1173
  %v1175 = vsel %vm1069, %v1040, 0.0
  %1176 = vadd.xlane.f32.xlu0 %v1175
  %v1177 = vpop.xlane.xlu0 %1176
  %v1178 = vsel %vm1069, %v1041, 0.0
  %1179 = vadd.xlane.f32.xlu0 %v1178
  %v1180 = vpop.xlane.xlu0 %1179
  %v1181 = vsel %vm1069, %v1042, 0.0
  %1182 = vadd.xlane.f32.xlu0 %v1181
  %v1183 = vpop.xlane.xlu0 %1182
  %v1184 = vsel %vm1069, %v1043, 0.0
  %1185 = vadd.xlane.f32.xlu0 %v1184
  %v1186 = vpop.xlane.xlu0 %1185
  %v1187 = vsel %vm1069, %v1044, 0.0
  %1188 = vadd.xlane.f32.xlu0 %v1187
  %v1189 = vpop.xlane.xlu0 %1188
  %v1190 = vsel %vm1069, %v1045, 0.0
  %1191 = vadd.xlane.f32.xlu0 %v1190
  %v1192 = vpop.xlane.xlu0 %1191
  %v1193 = vsel %vm1069, %v1046, 0.0
  %1194 = vadd.xlane.f32.xlu0 %v1193
  %v1195 = vpop.xlane.xlu0 %1194
  %v1196 = vsel %vm1069, %v1047, 0.0
  %1197 = vadd.xlane.f32.xlu0 %v1196
  %v1198 = vpop.xlane.xlu0 %1197
  %v1199 = vsel %vm1069, %v1048, 0.0
  %1200 = vadd.xlane.f32.xlu0 %v1199
  %v1201 = vpop.xlane.xlu0 %1200
  %v1202 = vsel %vm1069, %v1049, 0.0
  %1203 = vadd.xlane.f32.xlu0 %v1202
  %v1204 = vpop.xlane.xlu0 %1203
  %v1205 = vsel %vm1069, %v1050, 0.0
  %1206 = vadd.xlane.f32.xlu0 %v1205
  %v1207 = vpop.xlane.xlu0 %1206
  %v1208 = vsel %vm1069, %v1051, 0.0
  %1209 = vadd.xlane.f32.xlu0 %v1208
  %v1210 = vpop.xlane.xlu0 %1209
  %v1211 = vsel %vm1069, %v1052, 0.0
  %1212 = vadd.xlane.f32.xlu0 %v1211
  %v1213 = vpop.xlane.xlu0 %1212
  %v1214 = vsel %vm1069, %v1053, 0.0
  %1215 = vadd.xlane.f32.xlu0 %v1214
  %v1216 = vpop.xlane.xlu0 %1215
  %v1217 = vsel %vm1069, %v1054, 0.0
  %1218 = vadd.xlane.f32.xlu0 %v1217
  %v1219 = vpop.xlane.xlu0 %1218
  %v1220 = vsel %vm1069, %v1055, 0.0
  %1221 = vadd.xlane.f32.xlu0 %v1220
  %v1222 = vpop.xlane.xlu0 %1221
  %v1223 = vsel %vm1069, %v1056, 0.0
  %1224 = vadd.xlane.f32.xlu0 %v1223
  %v1225 = vpop.xlane.xlu0 %1224
  %v1226 = vsel %vm1069, %v1057, 0.0
  %1227 = vadd.xlane.f32.xlu0 %v1226
  %v1228 = vpop.xlane.xlu0 %1227
  %v1229 = vsel %vm1069, %v1058, 0.0
  %1230 = vadd.xlane.f32.xlu0 %v1229
  %v1231 = vpop.xlane.xlu0 %1230
  %v1232 = vsel %vm1069, %v1059, 0.0
  %1233 = vadd.xlane.f32.xlu0 %v1232
  %v1234 = vpop.xlane.xlu0 %1233
  %v1235 = vsel %vm1069, %v1060, 0.0
  %1236 = vadd.xlane.f32.xlu0 %v1235
  %v1237 = vpop.xlane.xlu0 %1236
  %v1238 = vsel %vm1069, %v1061, 0.0
  %1239 = vadd.xlane.f32.xlu0 %v1238
  %v1240 = vpop.xlane.xlu0 %1239
  %v1241 = vsel %vm1069, %v1062, 0.0
  %1242 = vadd.xlane.f32.xlu0 %v1241
  %v1243 = vpop.xlane.xlu0 %1242
  %v1244 = vsel %vm1069, %v1063, 0.0
  %1245 = vadd.xlane.f32.xlu0 %v1244
  %v1246 = vpop.xlane.xlu0 %1245
  %v1247 = vsel %vm1069, %v1064, 0.0
  %1248 = vadd.xlane.f32.xlu0 %v1247
  %v1249 = vpop.xlane.xlu0 %1248
  %v1250 = vsel %vm1069, %v1065, 0.0
  %1251 = vadd.xlane.f32.xlu0 %v1250
  %v1252 = vpop.xlane.xlu0 %1251
  %v1253 = vsel %vm1069, %v1066, 0.0
  %1254 = vadd.xlane.f32.xlu0 %v1253
  %v1255 = vpop.xlane.xlu0 %1254
  %v1256 = vsel %vm1069, %v1067, 0.0
  %1257 = vadd.xlane.f32.xlu0 %v1256
  %v1258 = vpop.xlane.xlu0 %1257
  %v1259 = vsel %vm1069, %v1068, 0.0
  %1260 = vadd.xlane.f32.xlu0 %v1259
  %v1261 = vpop.xlane.xlu0 %1260
  %v1326 = vlaneseq
  %v1327 = vand.u32 %v1326, 127
  %v1328 = vlaneseq
  %v1329 = vshrl.u32 %v1328, 7
  %v1330 = vsub.s32 %v1327, %v1329
  %v1331 = vrot.slane %v1072, %v1330
  %v1332 = vadd.s32 %v1327, 4294967288
  %v1333 = vlaneseq
  %v1334 = vshrl.u32 %v1333, 7
  %v1335 = vsub.s32 %v1332, %v1334
  %v1336 = vrot.slane %v1075, %v1335
  %vm1337 = vcmask 130112
  %v1338 = vsel %vm1337, %v1336, %v1331
  %v1339 = vadd.s32 %v1327, 4294967280
  %v1340 = vlaneseq
  %v1341 = vshrl.u32 %v1340, 7
  %v1342 = vsub.s32 %v1339, %v1341
  %v1343 = vrot.slane %v1078, %v1342
  %vm1344 = vcmask 195712
  %v1345 = vsel %vm1344, %v1343, %v1338
  %v1346 = vadd.s32 %v1327, 4294967272
  %v1347 = vlaneseq
  %v1348 = vshrl.u32 %v1347, 7
  %v1349 = vsub.s32 %v1346, %v1348
  %v1350 = vrot.slane %v1081, %v1349
  %vm1351 = vcmask 261312
  %v1352 = vsel %vm1351, %v1350, %v1345
  %v1353 = vadd.s32 %v1327, 4294967264
  %v1354 = vlaneseq
  %v1355 = vshrl.u32 %v1354, 7
  %v1356 = vsub.s32 %v1353, %v1355
  %v1357 = vrot.slane %v1084, %v1356
  %vm1358 = vcmask 326912
  %v1359 = vsel %vm1358, %v1357, %v1352
  %v1360 = vadd.s32 %v1327, 4294967256
  %v1361 = vlaneseq
  %v1362 = vshrl.u32 %v1361, 7
  %v1363 = vsub.s32 %v1360, %v1362
  %v1364 = vrot.slane %v1087, %v1363
  %vm1365 = vcmask 392512
  %v1366 = vsel %vm1365, %v1364, %v1359
  %v1367 = vadd.s32 %v1327, 4294967248
  %v1368 = vlaneseq
  %v1369 = vshrl.u32 %v1368, 7
  %v1370 = vsub.s32 %v1367, %v1369
  %v1371 = vrot.slane %v1090, %v1370
  %vm1372 = vcmask 458112
  %v1373 = vsel %vm1372, %v1371, %v1366
  %v1374 = vadd.s32 %v1327, 4294967240
  %v1375 = vlaneseq
  %v1376 = vshrl.u32 %v1375, 7
  %v1377 = vsub.s32 %v1374, %v1376
  %v1378 = vrot.slane %v1093, %v1377
  %vm1379 = vcmask 523712
  %v1380 = vsel %vm1379, %v1378, %v1373
  %v1381 = vlaneseq
  %v1382 = vshrl.u32 %v1381, 7
  %v1383 = vsub.s32 %v1327, %v1382
  %v1384 = vrot.slane %v1096, %v1383
  %v1385 = vlaneseq
  %v1386 = vshrl.u32 %v1385, 7
  %v1387 = vsub.s32 %v1332, %v1386
  %v1388 = vrot.slane %v1099, %v1387
  %v1389 = vsel %vm1337, %v1388, %v1384
  %v1390 = vlaneseq
  %v1391 = vshrl.u32 %v1390, 7
  %v1392 = vsub.s32 %v1339, %v1391
  %v1393 = vrot.slane %v1102, %v1392
  %v1394 = vsel %vm1344, %v1393, %v1389
  %v1395 = vlaneseq
  %v1396 = vshrl.u32 %v1395, 7
  %v1397 = vsub.s32 %v1346, %v1396
  %v1398 = vrot.slane %v1105, %v1397
  %v1399 = vsel %vm1351, %v1398, %v1394
  %v1400 = vlaneseq
  %v1401 = vshrl.u32 %v1400, 7
  %v1402 = vsub.s32 %v1353, %v1401
  %v1403 = vrot.slane %v1108, %v1402
  %v1404 = vsel %vm1358, %v1403, %v1399
  %v1405 = vlaneseq
  %v1406 = vshrl.u32 %v1405, 7
  %v1407 = vsub.s32 %v1360, %v1406
  %v1408 = vrot.slane %v1111, %v1407
  %v1409 = vsel %vm1365, %v1408, %v1404
  %v1410 = vlaneseq
  %v1411 = vshrl.u32 %v1410, 7
  %v1412 = vsub.s32 %v1367, %v1411
  %v1413 = vrot.slane %v1114, %v1412
  %v1414 = vsel %vm1372, %v1413, %v1409
  %v1415 = vlaneseq
  %v1416 = vshrl.u32 %v1415, 7
  %v1417 = vsub.s32 %v1374, %v1416
  %v1418 = vrot.slane %v1117, %v1417
  %v1419 = vsel %vm1379, %v1418, %v1414
  %v1420 = vlaneseq
  %v1421 = vshrl.u32 %v1420, 7
  %v1422 = vsub.s32 %v1327, %v1421
  %v1423 = vrot.slane %v1120, %v1422
  %v1424 = vlaneseq
  %v1425 = vshrl.u32 %v1424, 7
  %v1426 = vsub.s32 %v1332, %v1425
  %v1427 = vrot.slane %v1123, %v1426
  %v1428 = vsel %vm1337, %v1427, %v1423
  %v1429 = vlaneseq
  %v1430 = vshrl.u32 %v1429, 7
  %v1431 = vsub.s32 %v1339, %v1430
  %v1432 = vrot.slane %v1126, %v1431
  %v1433 = vsel %vm1344, %v1432, %v1428
  %v1434 = vlaneseq
  %v1435 = vshrl.u32 %v1434, 7
  %v1436 = vsub.s32 %v1346, %v1435
  %v1437 = vrot.slane %v1129, %v1436
  %v1438 = vsel %vm1351, %v1437, %v1433
  %v1439 = vlaneseq
  %v1440 = vshrl.u32 %v1439, 7
  %v1441 = vsub.s32 %v1353, %v1440
  %v1442 = vrot.slane %v1132, %v1441
  %v1443 = vsel %vm1358, %v1442, %v1438
  %v1444 = vlaneseq
  %v1445 = vshrl.u32 %v1444, 7
  %v1446 = vsub.s32 %v1360, %v1445
  %v1447 = vrot.slane %v1135, %v1446
  %v1448 = vsel %vm1365, %v1447, %v1443
  %v1449 = vlaneseq
  %v1450 = vshrl.u32 %v1449, 7
  %v1451 = vsub.s32 %v1367, %v1450
  %v1452 = vrot.slane %v1138, %v1451
  %v1453 = vsel %vm1372, %v1452, %v1448
  %v1454 = vlaneseq
  %v1455 = vshrl.u32 %v1454, 7
  %v1456 = vsub.s32 %v1374, %v1455
  %v1457 = vrot.slane %v1141, %v1456
  %v1458 = vsel %vm1379, %v1457, %v1453
  %v1459 = vlaneseq
  %v1460 = vshrl.u32 %v1459, 7
  %v1461 = vsub.s32 %v1327, %v1460
  %v1462 = vrot.slane %v1144, %v1461
  %v1463 = vlaneseq
  %v1464 = vshrl.u32 %v1463, 7
  %v1465 = vsub.s32 %v1332, %v1464
  %v1466 = vrot.slane %v1147, %v1465
  %v1467 = vsel %vm1337, %v1466, %v1462
  %v1468 = vlaneseq
  %v1469 = vshrl.u32 %v1468, 7
  %v1470 = vsub.s32 %v1339, %v1469
  %v1471 = vrot.slane %v1150, %v1470
  %v1472 = vsel %vm1344, %v1471, %v1467
  %v1473 = vlaneseq
  %v1474 = vshrl.u32 %v1473, 7
  %v1475 = vsub.s32 %v1346, %v1474
  %v1476 = vrot.slane %v1153, %v1475
  %v1477 = vsel %vm1351, %v1476, %v1472
  %v1478 = vlaneseq
  %v1479 = vshrl.u32 %v1478, 7
  %v1480 = vsub.s32 %v1353, %v1479
  %v1481 = vrot.slane %v1156, %v1480
  %v1482 = vsel %vm1358, %v1481, %v1477
  %v1483 = vlaneseq
  %v1484 = vshrl.u32 %v1483, 7
  %v1485 = vsub.s32 %v1360, %v1484
  %v1486 = vrot.slane %v1159, %v1485
  %v1487 = vsel %vm1365, %v1486, %v1482
  %v1488 = vlaneseq
  %v1489 = vshrl.u32 %v1488, 7
  %v1490 = vsub.s32 %v1367, %v1489
  %v1491 = vrot.slane %v1162, %v1490
  %v1492 = vsel %vm1372, %v1491, %v1487
  %v1493 = vlaneseq
  %v1494 = vshrl.u32 %v1493, 7
  %v1495 = vsub.s32 %v1374, %v1494
  %v1496 = vrot.slane %v1165, %v1495
  %v1497 = vsel %vm1379, %v1496, %v1492
  %v1498 = vlaneseq
  %v1499 = vshrl.u32 %v1498, 7
  %v1500 = vsub.s32 %v1327, %v1499
  %v1501 = vrot.slane %v1168, %v1500
  %v1502 = vlaneseq
  %v1503 = vshrl.u32 %v1502, 7
  %v1504 = vsub.s32 %v1332, %v1503
  %v1505 = vrot.slane %v1171, %v1504
  %v1506 = vsel %vm1337, %v1505, %v1501
  %v1507 = vlaneseq
  %v1508 = vshrl.u32 %v1507, 7
  %v1509 = vsub.s32 %v1339, %v1508
  %v1510 = vrot.slane %v1174, %v1509
  %v1511 = vsel %vm1344, %v1510, %v1506
  %v1512 = vlaneseq
  %v1513 = vshrl.u32 %v1512, 7
  %v1514 = vsub.s32 %v1346, %v1513
  %v1515 = vrot.slane %v1177, %v1514
  %v1516 = vsel %vm1351, %v1515, %v1511
  %v1517 = vlaneseq
  %v1518 = vshrl.u32 %v1517, 7
  %v1519 = vsub.s32 %v1353, %v1518
  %v1520 = vrot.slane %v1180, %v1519
  %v1521 = vsel %vm1358, %v1520, %v1516
  %v1522 = vlaneseq
  %v1523 = vshrl.u32 %v1522, 7
  %v1524 = vsub.s32 %v1360, %v1523
  %v1525 = vrot.slane %v1183, %v1524
  %v1526 = vsel %vm1365, %v1525, %v1521
  %v1527 = vlaneseq
  %v1528 = vshrl.u32 %v1527, 7
  %v1529 = vsub.s32 %v1367, %v1528
  %v1530 = vrot.slane %v1186, %v1529
  %v1531 = vsel %vm1372, %v1530, %v1526
  %v1532 = vlaneseq
  %v1533 = vshrl.u32 %v1532, 7
  %v1534 = vsub.s32 %v1374, %v1533
  %v1535 = vrot.slane %v1189, %v1534
  %v1536 = vsel %vm1379, %v1535, %v1531
  %v1537 = vlaneseq
  %v1538 = vshrl.u32 %v1537, 7
  %v1539 = vsub.s32 %v1327, %v1538
  %v1540 = vrot.slane %v1192, %v1539
  %v1541 = vlaneseq
  %v1542 = vshrl.u32 %v1541, 7
  %v1543 = vsub.s32 %v1332, %v1542
  %v1544 = vrot.slane %v1195, %v1543
  %v1545 = vsel %vm1337, %v1544, %v1540
  %v1546 = vlaneseq
  %v1547 = vshrl.u32 %v1546, 7
  %v1548 = vsub.s32 %v1339, %v1547
  %v1549 = vrot.slane %v1198, %v1548
  %v1550 = vsel %vm1344, %v1549, %v1545
  %v1551 = vlaneseq
  %v1552 = vshrl.u32 %v1551, 7
  %v1553 = vsub.s32 %v1346, %v1552
  %v1554 = vrot.slane %v1201, %v1553
  %v1555 = vsel %vm1351, %v1554, %v1550
  %v1556 = vlaneseq
  %v1557 = vshrl.u32 %v1556, 7
  %v1558 = vsub.s32 %v1353, %v1557
  %v1559 = vrot.slane %v1204, %v1558
  %v1560 = vsel %vm1358, %v1559, %v1555
  %v1561 = vlaneseq
  %v1562 = vshrl.u32 %v1561, 7
  %v1563 = vsub.s32 %v1360, %v1562
  %v1564 = vrot.slane %v1207, %v1563
  %v1565 = vsel %vm1365, %v1564, %v1560
  %v1566 = vlaneseq
  %v1567 = vshrl.u32 %v1566, 7
  %v1568 = vsub.s32 %v1367, %v1567
  %v1569 = vrot.slane %v1210, %v1568
  %v1570 = vsel %vm1372, %v1569, %v1565
  %v1571 = vlaneseq
  %v1572 = vshrl.u32 %v1571, 7
  %v1573 = vsub.s32 %v1374, %v1572
  %v1574 = vrot.slane %v1213, %v1573
  %v1575 = vsel %vm1379, %v1574, %v1570
  %v1576 = vlaneseq
  %v1577 = vshrl.u32 %v1576, 7
  %v1578 = vsub.s32 %v1327, %v1577
  %v1579 = vrot.slane %v1216, %v1578
  %v1580 = vlaneseq
  %v1581 = vshrl.u32 %v1580, 7
  %v1582 = vsub.s32 %v1332, %v1581
  %v1583 = vrot.slane %v1219, %v1582
  %v1584 = vsel %vm1337, %v1583, %v1579
  %v1585 = vlaneseq
  %v1586 = vshrl.u32 %v1585, 7
  %v1587 = vsub.s32 %v1339, %v1586
  %v1588 = vrot.slane %v1222, %v1587
  %v1589 = vsel %vm1344, %v1588, %v1584
  %v1590 = vlaneseq
  %v1591 = vshrl.u32 %v1590, 7
  %v1592 = vsub.s32 %v1346, %v1591
  %v1593 = vrot.slane %v1225, %v1592
  %v1594 = vsel %vm1351, %v1593, %v1589
  %v1595 = vlaneseq
  %v1596 = vshrl.u32 %v1595, 7
  %v1597 = vsub.s32 %v1353, %v1596
  %v1598 = vrot.slane %v1228, %v1597
  %v1599 = vsel %vm1358, %v1598, %v1594
  %v1600 = vlaneseq
  %v1601 = vshrl.u32 %v1600, 7
  %v1602 = vsub.s32 %v1360, %v1601
  %v1603 = vrot.slane %v1231, %v1602
  %v1604 = vsel %vm1365, %v1603, %v1599
  %v1605 = vlaneseq
  %v1606 = vshrl.u32 %v1605, 7
  %v1607 = vsub.s32 %v1367, %v1606
  %v1608 = vrot.slane %v1234, %v1607
  %v1609 = vsel %vm1372, %v1608, %v1604
  %v1610 = vlaneseq
  %v1611 = vshrl.u32 %v1610, 7
  %v1612 = vsub.s32 %v1374, %v1611
  %v1613 = vrot.slane %v1237, %v1612
  %v1614 = vsel %vm1379, %v1613, %v1609
  %v1615 = vlaneseq
  %v1616 = vshrl.u32 %v1615, 7
  %v1617 = vsub.s32 %v1327, %v1616
  %v1618 = vrot.slane %v1240, %v1617
  %v1619 = vlaneseq
  %v1620 = vshrl.u32 %v1619, 7
  %v1621 = vsub.s32 %v1332, %v1620
  %v1622 = vrot.slane %v1243, %v1621
  %v1623 = vsel %vm1337, %v1622, %v1618
  %v1624 = vlaneseq
  %v1625 = vshrl.u32 %v1624, 7
  %v1626 = vsub.s32 %v1339, %v1625
  %v1627 = vrot.slane %v1246, %v1626
  %v1628 = vsel %vm1344, %v1627, %v1623
  %v1629 = vlaneseq
  %v1630 = vshrl.u32 %v1629, 7
  %v1631 = vsub.s32 %v1346, %v1630
  %v1632 = vrot.slane %v1249, %v1631
  %v1633 = vsel %vm1351, %v1632, %v1628
  %v1634 = vlaneseq
  %v1635 = vshrl.u32 %v1634, 7
  %v1636 = vsub.s32 %v1353, %v1635
  %v1637 = vrot.slane %v1252, %v1636
  %v1638 = vsel %vm1358, %v1637, %v1633
  %v1639 = vlaneseq
  %v1640 = vshrl.u32 %v1639, 7
  %v1641 = vsub.s32 %v1360, %v1640
  %v1642 = vrot.slane %v1255, %v1641
  %v1643 = vsel %vm1365, %v1642, %v1638
  %v1644 = vlaneseq
  %v1645 = vshrl.u32 %v1644, 7
  %v1646 = vsub.s32 %v1367, %v1645
  %v1647 = vrot.slane %v1258, %v1646
  %v1648 = vsel %vm1372, %v1647, %v1643
  %v1649 = vlaneseq
  %v1650 = vshrl.u32 %v1649, 7
  %v1651 = vsub.s32 %v1374, %v1650
  %v1652 = vrot.slane %v1261, %v1651
  %v1653 = vsel %vm1379, %v1652, %v1648
  %vm1654 = vcmask 1041409
  %v1655 = vsel %vm1654, %v1419, %v1380
  %vm1656 = vcmask 1042434
  %v1657 = vsel %vm1656, %v1458, %v1655
  %vm1658 = vcmask 1043459
  %v1659 = vsel %vm1658, %v1497, %v1657
  %vm1660 = vcmask 1044484
  %v1661 = vsel %vm1660, %v1536, %v1659
  %vm1662 = vcmask 1045509
  %v1663 = vsel %vm1662, %v1575, %v1661
  %vm1664 = vcmask 1046534
  %v1665 = vsel %vm1664, %v1614, %v1663
  %vm1666 = vcmask 1047559
  %v1667 = vsel %vm1666, %v1653, %v1665
  %vm1669 = vcmask 523264
  %v1670 = vsel %vm1669, %v1667, 0.0
  %1671 = vadd.xlane.f32.xlu0 %v1670
  %v1672 = vpop.xlane.xlu0 %1671
  %v1673 = vld [vmem:[%s4] sm:$0xff]
  %v1674 = vadd.f32 %v1672, %v1673
  %v1675 = vtanh.pop %v1674
  %v1676 = vld [vmem:[%s5] sm:$0xff]
  %v1677 = vadd.f32 %v1675, %v1676
  %v1678 = vsub.f32 %v1677, -1.0
  %v1679 = vmul.f32 %v1678, 1.5
  %v1680 = vsub.f32 %v1679, 0.5
  %v1681 = vceil.f32 %v1680
  %v1682 = vmax.f32 %v1681, 0.0
  %v1683 = vmin.f32 %v1682, 3.0
  %vm1684 = vcmp.eq.f32.partialorder %v1683, 0.0
  %v1685 = vsel %vm1684, -1.0, 0.0
  %vm1686 = vcmp.eq.f32.partialorder %v1683, 1.0
  %v1687 = vsel %vm1686, -0.33333334, %v1685
  %vm1688 = vcmp.eq.f32.partialorder %v1683, 2.0
  %v1689 = vsel %vm1688, 0.33333334, %v1687
  %vm1690 = vcmp.eq.f32.partialorder %v1683, 3.0
  %v1691 = vsel %vm1690, 1.0, %v1689
  %vm1692 = vcmask 7168
  %1693 = vst.msk [vmem:[%s6] sm:$0xff] %vm1692, %v1691
  %1702 = vrot.lane.b32.xlu0 %v933, 112
  %v1703 = vpop.permute.xlu0 %1702
  %1704 = vrot.lane.b32.xlu0 %v934, 112
  %v1705 = vpop.permute.xlu0 %1704
  %1706 = vrot.lane.b32.xlu0 %v935, 112
  %v1707 = vpop.permute.xlu0 %1706
  %1708 = vrot.lane.b32.xlu0 %v936, 112
  %v1709 = vpop.permute.xlu0 %1708
  %1710 = vrot.lane.b32.xlu0 %v937, 112
  %v1711 = vpop.permute.xlu0 %1710
  %1712 = vrot.lane.b32.xlu0 %v938, 112
  %v1713 = vpop.permute.xlu0 %1712
  %1714 = vrot.lane.b32.xlu0 %v939, 112
  %v1715 = vpop.permute.xlu0 %1714
  %1716 = vrot.lane.b32.xlu0 %v940, 112
  %v1717 = vpop.permute.xlu0 %1716
  %v1726 = vmul.f32 %v941, %v1703
  %v1727 = vmul.f32 %v942, %v1705
  %v1728 = vmul.f32 %v943, %v1707
  %v1729 = vmul.f32 %v944, %v1709
  %v1730 = vmul.f32 %v945, %v1711
  %v1731 = vmul.f32 %v946, %v1713
  %v1732 = vmul.f32 %v947, %v1715
  %v1733 = vmul.f32 %v948, %v1717
  %v1734 = vmul.f32 %v949, %v1703
  %v1735 = vmul.f32 %v950, %v1705
  %v1736 = vmul.f32 %v951, %v1707
  %v1737 = vmul.f32 %v952, %v1709
  %v1738 = vmul.f32 %v953, %v1711
  %v1739 = vmul.f32 %v954, %v1713
  %v1740 = vmul.f32 %v955, %v1715
  %v1741 = vmul.f32 %v956, %v1717
  %v1742 = vmul.f32 %v957, %v1703
  %v1743 = vmul.f32 %v958, %v1705
  %v1744 = vmul.f32 %v959, %v1707
  %v1745 = vmul.f32 %v960, %v1709
  %v1746 = vmul.f32 %v961, %v1711
  %v1747 = vmul.f32 %v962, %v1713
  %v1748 = vmul.f32 %v963, %v1715
  %v1749 = vmul.f32 %v964, %v1717
  %v1750 = vmul.f32 %v965, %v1703
  %v1751 = vmul.f32 %v966, %v1705
  %v1752 = vmul.f32 %v967, %v1707
  %v1753 = vmul.f32 %v968, %v1709
  %v1754 = vmul.f32 %v969, %v1711
  %v1755 = vmul.f32 %v970, %v1713
  %v1756 = vmul.f32 %v971, %v1715
  %v1757 = vmul.f32 %v972, %v1717
  %v1758 = vmul.f32 %v973, %v1703
  %v1759 = vmul.f32 %v974, %v1705
  %v1760 = vmul.f32 %v975, %v1707
  %v1761 = vmul.f32 %v976, %v1709
  %v1762 = vmul.f32 %v977, %v1711
  %v1763 = vmul.f32 %v978, %v1713
  %v1764 = vmul.f32 %v979, %v1715
  %v1765 = vmul.f32 %v980, %v1717
  %v1766 = vmul.f32 %v981, %v1703
  %v1767 = vmul.f32 %v982, %v1705
  %v1768 = vmul.f32 %v983, %v1707
  %v1769 = vmul.f32 %v984, %v1709
  %v1770 = vmul.f32 %v985, %v1711
  %v1771 = vmul.f32 %v986, %v1713
  %v1772 = vmul.f32 %v987, %v1715
  %v1773 = vmul.f32 %v988, %v1717
  %v1774 = vmul.f32 %v989, %v1703
  %v1775 = vmul.f32 %v990, %v1705
  %v1776 = vmul.f32 %v991, %v1707
  %v1777 = vmul.f32 %v992, %v1709
  %v1778 = vmul.f32 %v993, %v1711
  %v1779 = vmul.f32 %v994, %v1713
  %v1780 = vmul.f32 %v995, %v1715
  %v1781 = vmul.f32 %v996, %v1717
  %v1782 = vmul.f32 %v997, %v1703
  %v1783 = vmul.f32 %v998, %v1705
  %v1784 = vmul.f32 %v999, %v1707
  %v1785 = vmul.f32 %v1000, %v1709
  %v1786 = vmul.f32 %v1001, %v1711
  %v1787 = vmul.f32 %v1002, %v1713
  %v1788 = vmul.f32 %v1003, %v1715
  %v1789 = vmul.f32 %v1004, %v1717
  %v1790 = vsel %vm1069, %v1726, 0.0
  %1791 = vadd.xlane.f32.xlu0 %v1790
  %v1792 = vpop.xlane.xlu0 %1791
  %v1793 = vsel %vm1069, %v1727, 0.0
  %1794 = vadd.xlane.f32.xlu0 %v1793
  %v1795 = vpop.xlane.xlu0 %1794
  %v1796 = vsel %vm1069, %v1728, 0.0
  %1797 = vadd.xlane.f32.xlu0 %v1796
  %v1798 = vpop.xlane.xlu0 %1797
  %v1799 = vsel %vm1069, %v1729, 0.0
  %1800 = vadd.xlane.f32.xlu0 %v1799
  %v1801 = vpop.xlane.xlu0 %1800
  %v1802 = vsel %vm1069, %v1730, 0.0
  %1803 = vadd.xlane.f32.xlu0 %v1802
  %v1804 = vpop.xlane.xlu0 %1803
  %v1805 = vsel %vm1069, %v1731, 0.0
  %1806 = vadd.xlane.f32.xlu0 %v1805
  %v1807 = vpop.xlane.xlu0 %1806
  %v1808 = vsel %vm1069, %v1732, 0.0
  %1809 = vadd.xlane.f32.xlu0 %v1808
  %v1810 = vpop.xlane.xlu0 %1809
  %v1811 = vsel %vm1069, %v1733, 0.0
  %1812 = vadd.xlane.f32.xlu0 %v1811
  %v1813 = vpop.xlane.xlu0 %1812
  %v1814 = vsel %vm1069, %v1734, 0.0
  %1815 = vadd.xlane.f32.xlu0 %v1814
  %v1816 = vpop.xlane.xlu0 %1815
  %v1817 = vsel %vm1069, %v1735, 0.0
  %1818 = vadd.xlane.f32.xlu0 %v1817
  %v1819 = vpop.xlane.xlu0 %1818
  %v1820 = vsel %vm1069, %v1736, 0.0
  %1821 = vadd.xlane.f32.xlu0 %v1820
  %v1822 = vpop.xlane.xlu0 %1821
  %v1823 = vsel %vm1069, %v1737, 0.0
  %1824 = vadd.xlane.f32.xlu0 %v1823
  %v1825 = vpop.xlane.xlu0 %1824
  %v1826 = vsel %vm1069, %v1738, 0.0
  %1827 = vadd.xlane.f32.xlu0 %v1826
  %v1828 = vpop.xlane.xlu0 %1827
  %v1829 = vsel %vm1069, %v1739, 0.0
  %1830 = vadd.xlane.f32.xlu0 %v1829
  %v1831 = vpop.xlane.xlu0 %1830
  %v1832 = vsel %vm1069, %v1740, 0.0
  %1833 = vadd.xlane.f32.xlu0 %v1832
  %v1834 = vpop.xlane.xlu0 %1833
  %v1835 = vsel %vm1069, %v1741, 0.0
  %1836 = vadd.xlane.f32.xlu0 %v1835
  %v1837 = vpop.xlane.xlu0 %1836
  %v1838 = vsel %vm1069, %v1742, 0.0
  %1839 = vadd.xlane.f32.xlu0 %v1838
  %v1840 = vpop.xlane.xlu0 %1839
  %v1841 = vsel %vm1069, %v1743, 0.0
  %1842 = vadd.xlane.f32.xlu0 %v1841
  %v1843 = vpop.xlane.xlu0 %1842
  %v1844 = vsel %vm1069, %v1744, 0.0
  %1845 = vadd.xlane.f32.xlu0 %v1844
  %v1846 = vpop.xlane.xlu0 %1845
  %v1847 = vsel %vm1069, %v1745, 0.0
  %1848 = vadd.xlane.f32.xlu0 %v1847
  %v1849 = vpop.xlane.xlu0 %1848
  %v1850 = vsel %vm1069, %v1746, 0.0
  %1851 = vadd.xlane.f32.xlu0 %v1850
  %v1852 = vpop.xlane.xlu0 %1851
  %v1853 = vsel %vm1069, %v1747, 0.0
  %1854 = vadd.xlane.f32.xlu0 %v1853
  %v1855 = vpop.xlane.xlu0 %1854
  %v1856 = vsel %vm1069, %v1748, 0.0
  %1857 = vadd.xlane.f32.xlu0 %v1856
  %v1858 = vpop.xlane.xlu0 %1857
  %v1859 = vsel %vm1069, %v1749, 0.0
  %1860 = vadd.xlane.f32.xlu0 %v1859
  %v1861 = vpop.xlane.xlu0 %1860
  %v1862 = vsel %vm1069, %v1750, 0.0
  %1863 = vadd.xlane.f32.xlu0 %v1862
  %v1864 = vpop.xlane.xlu0 %1863
  %v1865 = vsel %vm1069, %v1751, 0.0
  %1866 = vadd.xlane.f32.xlu0 %v1865
  %v1867 = vpop.xlane.xlu0 %1866
  %v1868 = vsel %vm1069, %v1752, 0.0
  %1869 = vadd.xlane.f32.xlu0 %v1868
  %v1870 = vpop.xlane.xlu0 %1869
  %v1871 = vsel %vm1069, %v1753, 0.0
  %1872 = vadd.xlane.f32.xlu0 %v1871
  %v1873 = vpop.xlane.xlu0 %1872
  %v1874 = vsel %vm1069, %v1754, 0.0
  %1875 = vadd.xlane.f32.xlu0 %v1874
  %v1876 = vpop.xlane.xlu0 %1875
  %v1877 = vsel %vm1069, %v1755, 0.0
  %1878 = vadd.xlane.f32.xlu0 %v1877
  %v1879 = vpop.xlane.xlu0 %1878
  %v1880 = vsel %vm1069, %v1756, 0.0
  %1881 = vadd.xlane.f32.xlu0 %v1880
  %v1882 = vpop.xlane.xlu0 %1881
  %v1883 = vsel %vm1069, %v1757, 0.0
  %1884 = vadd.xlane.f32.xlu0 %v1883
  %v1885 = vpop.xlane.xlu0 %1884
  %v1886 = vsel %vm1069, %v1758, 0.0
  %1887 = vadd.xlane.f32.xlu0 %v1886
  %v1888 = vpop.xlane.xlu0 %1887
  %v1889 = vsel %vm1069, %v1759, 0.0
  %1890 = vadd.xlane.f32.xlu0 %v1889
  %v1891 = vpop.xlane.xlu0 %1890
  %v1892 = vsel %vm1069, %v1760, 0.0
  %1893 = vadd.xlane.f32.xlu0 %v1892
  %v1894 = vpop.xlane.xlu0 %1893
  %v1895 = vsel %vm1069, %v1761, 0.0
  %1896 = vadd.xlane.f32.xlu0 %v1895
  %v1897 = vpop.xlane.xlu0 %1896
  %v1898 = vsel %vm1069, %v1762, 0.0
  %1899 = vadd.xlane.f32.xlu0 %v1898
  %v1900 = vpop.xlane.xlu0 %1899
  %v1901 = vsel %vm1069, %v1763, 0.0
  %1902 = vadd.xlane.f32.xlu0 %v1901
  %v1903 = vpop.xlane.xlu0 %1902
  %v1904 = vsel %vm1069, %v1764, 0.0
  %1905 = vadd.xlane.f32.xlu0 %v1904
  %v1906 = vpop.xlane.xlu0 %1905
  %v1907 = vsel %vm1069, %v1765, 0.0
  %1908 = vadd.xlane.f32.xlu0 %v1907
  %v1909 = vpop.xlane.xlu0 %1908
  %v1910 = vsel %vm1069, %v1766, 0.0
  %1911 = vadd.xlane.f32.xlu0 %v1910
  %v1912 = vpop.xlane.xlu0 %1911
  %v1913 = vsel %vm1069, %v1767, 0.0
  %1914 = vadd.xlane.f32.xlu0 %v1913
  %v1915 = vpop.xlane.xlu0 %1914
  %v1916 = vsel %vm1069, %v1768, 0.0
  %1917 = vadd.xlane.f32.xlu0 %v1916
  %v1918 = vpop.xlane.xlu0 %1917
  %v1919 = vsel %vm1069, %v1769, 0.0
  %1920 = vadd.xlane.f32.xlu0 %v1919
  %v1921 = vpop.xlane.xlu0 %1920
  %v1922 = vsel %vm1069, %v1770, 0.0
  %1923 = vadd.xlane.f32.xlu0 %v1922
  %v1924 = vpop.xlane.xlu0 %1923
  %v1925 = vsel %vm1069, %v1771, 0.0
  %1926 = vadd.xlane.f32.xlu0 %v1925
  %v1927 = vpop.xlane.xlu0 %1926
  %v1928 = vsel %vm1069, %v1772, 0.0
  %1929 = vadd.xlane.f32.xlu0 %v1928
  %v1930 = vpop.xlane.xlu0 %1929
  %v1931 = vsel %vm1069, %v1773, 0.0
  %1932 = vadd.xlane.f32.xlu0 %v1931
  %v1933 = vpop.xlane.xlu0 %1932
  %v1934 = vsel %vm1069, %v1774, 0.0
  %1935 = vadd.xlane.f32.xlu0 %v1934
  %v1936 = vpop.xlane.xlu0 %1935
  %v1937 = vsel %vm1069, %v1775, 0.0
  %1938 = vadd.xlane.f32.xlu0 %v1937
  %v1939 = vpop.xlane.xlu0 %1938
  %v1940 = vsel %vm1069, %v1776, 0.0
  %1941 = vadd.xlane.f32.xlu0 %v1940
  %v1942 = vpop.xlane.xlu0 %1941
  %v1943 = vsel %vm1069, %v1777, 0.0
  %1944 = vadd.xlane.f32.xlu0 %v1943
  %v1945 = vpop.xlane.xlu0 %1944
  %v1946 = vsel %vm1069, %v1778, 0.0
  %1947 = vadd.xlane.f32.xlu0 %v1946
  %v1948 = vpop.xlane.xlu0 %1947
  %v1949 = vsel %vm1069, %v1779, 0.0
  %1950 = vadd.xlane.f32.xlu0 %v1949
  %v1951 = vpop.xlane.xlu0 %1950
  %v1952 = vsel %vm1069, %v1780, 0.0
  %1953 = vadd.xlane.f32.xlu0 %v1952
  %v1954 = vpop.xlane.xlu0 %1953
  %v1955 = vsel %vm1069, %v1781, 0.0
  %1956 = vadd.xlane.f32.xlu0 %v1955
  %v1957 = vpop.xlane.xlu0 %1956
  %v1958 = vsel %vm1069, %v1782, 0.0
  %1959 = vadd.xlane.f32.xlu0 %v1958
  %v1960 = vpop.xlane.xlu0 %1959
  %v1961 = vsel %vm1069, %v1783, 0.0
  %1962 = vadd.xlane.f32.xlu0 %v1961
  %v1963 = vpop.xlane.xlu0 %1962
  %v1964 = vsel %vm1069, %v1784, 0.0
  %1965 = vadd.xlane.f32.xlu0 %v1964
  %v1966 = vpop.xlane.xlu0 %1965
  %v1967 = vsel %vm1069, %v1785, 0.0
  %1968 = vadd.xlane.f32.xlu0 %v1967
  %v1969 = vpop.xlane.xlu0 %1968
  %v1970 = vsel %vm1069, %v1786, 0.0
  %1971 = vadd.xlane.f32.xlu0 %v1970
  %v1972 = vpop.xlane.xlu0 %1971
  %v1973 = vsel %vm1069, %v1787, 0.0
  %1974 = vadd.xlane.f32.xlu0 %v1973
  %v1975 = vpop.xlane.xlu0 %1974
  %v1976 = vsel %vm1069, %v1788, 0.0
  %1977 = vadd.xlane.f32.xlu0 %v1976
  %v1978 = vpop.xlane.xlu0 %1977
  %v1979 = vsel %vm1069, %v1789, 0.0
  %1980 = vadd.xlane.f32.xlu0 %v1979
  %v1981 = vpop.xlane.xlu0 %1980
  %v2046 = vlaneseq
  %v2047 = vshrl.u32 %v2046, 7
  %v2048 = vsub.s32 %v1327, %v2047
  %v2049 = vrot.slane %v1792, %v2048
  %v2050 = vlaneseq
  %v2051 = vshrl.u32 %v2050, 7
  %v2052 = vsub.s32 %v1332, %v2051
  %v2053 = vrot.slane %v1795, %v2052
  %v2054 = vsel %vm1337, %v2053, %v2049
  %v2055 = vlaneseq
  %v2056 = vshrl.u32 %v2055, 7
  %v2057 = vsub.s32 %v1339, %v2056
  %v2058 = vrot.slane %v1798, %v2057
  %v2059 = vsel %vm1344, %v2058, %v2054
  %v2060 = vlaneseq
  %v2061 = vshrl.u32 %v2060, 7
  %v2062 = vsub.s32 %v1346, %v2061
  %v2063 = vrot.slane %v1801, %v2062
  %v2064 = vsel %vm1351, %v2063, %v2059
  %v2065 = vlaneseq
  %v2066 = vshrl.u32 %v2065, 7
  %v2067 = vsub.s32 %v1353, %v2066
  %v2068 = vrot.slane %v1804, %v2067
  %v2069 = vsel %vm1358, %v2068, %v2064
  %v2070 = vlaneseq
  %v2071 = vshrl.u32 %v2070, 7
  %v2072 = vsub.s32 %v1360, %v2071
  %v2073 = vrot.slane %v1807, %v2072
  %v2074 = vsel %vm1365, %v2073, %v2069
  %v2075 = vlaneseq
  %v2076 = vshrl.u32 %v2075, 7
  %v2077 = vsub.s32 %v1367, %v2076
  %v2078 = vrot.slane %v1810, %v2077
  %v2079 = vsel %vm1372, %v2078, %v2074
  %v2080 = vlaneseq
  %v2081 = vshrl.u32 %v2080, 7
  %v2082 = vsub.s32 %v1374, %v2081
  %v2083 = vrot.slane %v1813, %v2082
  %v2084 = vsel %vm1379, %v2083, %v2079
  %v2085 = vlaneseq
  %v2086 = vshrl.u32 %v2085, 7
  %v2087 = vsub.s32 %v1327, %v2086
  %v2088 = vrot.slane %v1816, %v2087
  %v2089 = vlaneseq
  %v2090 = vshrl.u32 %v2089, 7
  %v2091 = vsub.s32 %v1332, %v2090
  %v2092 = vrot.slane %v1819, %v2091
  %v2093 = vsel %vm1337, %v2092, %v2088
  %v2094 = vlaneseq
  %v2095 = vshrl.u32 %v2094, 7
  %v2096 = vsub.s32 %v1339, %v2095
  %v2097 = vrot.slane %v1822, %v2096
  %v2098 = vsel %vm1344, %v2097, %v2093
  %v2099 = vlaneseq
  %v2100 = vshrl.u32 %v2099, 7
  %v2101 = vsub.s32 %v1346, %v2100
  %v2102 = vrot.slane %v1825, %v2101
  %v2103 = vsel %vm1351, %v2102, %v2098
  %v2104 = vlaneseq
  %v2105 = vshrl.u32 %v2104, 7
  %v2106 = vsub.s32 %v1353, %v2105
  %v2107 = vrot.slane %v1828, %v2106
  %v2108 = vsel %vm1358, %v2107, %v2103
  %v2109 = vlaneseq
  %v2110 = vshrl.u32 %v2109, 7
  %v2111 = vsub.s32 %v1360, %v2110
  %v2112 = vrot.slane %v1831, %v2111
  %v2113 = vsel %vm1365, %v2112, %v2108
  %v2114 = vlaneseq
  %v2115 = vshrl.u32 %v2114, 7
  %v2116 = vsub.s32 %v1367, %v2115
  %v2117 = vrot.slane %v1834, %v2116
  %v2118 = vsel %vm1372, %v2117, %v2113
  %v2119 = vlaneseq
  %v2120 = vshrl.u32 %v2119, 7
  %v2121 = vsub.s32 %v1374, %v2120
  %v2122 = vrot.slane %v1837, %v2121
  %v2123 = vsel %vm1379, %v2122, %v2118
  %v2124 = vlaneseq
  %v2125 = vshrl.u32 %v2124, 7
  %v2126 = vsub.s32 %v1327, %v2125
  %v2127 = vrot.slane %v1840, %v2126
  %v2128 = vlaneseq
  %v2129 = vshrl.u32 %v2128, 7
  %v2130 = vsub.s32 %v1332, %v2129
  %v2131 = vrot.slane %v1843, %v2130
  %v2132 = vsel %vm1337, %v2131, %v2127
  %v2133 = vlaneseq
  %v2134 = vshrl.u32 %v2133, 7
  %v2135 = vsub.s32 %v1339, %v2134
  %v2136 = vrot.slane %v1846, %v2135
  %v2137 = vsel %vm1344, %v2136, %v2132
  %v2138 = vlaneseq
  %v2139 = vshrl.u32 %v2138, 7
  %v2140 = vsub.s32 %v1346, %v2139
  %v2141 = vrot.slane %v1849, %v2140
  %v2142 = vsel %vm1351, %v2141, %v2137
  %v2143 = vlaneseq
  %v2144 = vshrl.u32 %v2143, 7
  %v2145 = vsub.s32 %v1353, %v2144
  %v2146 = vrot.slane %v1852, %v2145
  %v2147 = vsel %vm1358, %v2146, %v2142
  %v2148 = vlaneseq
  %v2149 = vshrl.u32 %v2148, 7
  %v2150 = vsub.s32 %v1360, %v2149
  %v2151 = vrot.slane %v1855, %v2150
  %v2152 = vsel %vm1365, %v2151, %v2147
  %v2153 = vlaneseq
  %v2154 = vshrl.u32 %v2153, 7
  %v2155 = vsub.s32 %v1367, %v2154
  %v2156 = vrot.slane %v1858, %v2155
  %v2157 = vsel %vm1372, %v2156, %v2152
  %v2158 = vlaneseq
  %v2159 = vshrl.u32 %v2158, 7
  %v2160 = vsub.s32 %v1374, %v2159
  %v2161 = vrot.slane %v1861, %v2160
  %v2162 = vsel %vm1379, %v2161, %v2157
  %v2163 = vlaneseq
  %v2164 = vshrl.u32 %v2163, 7
  %v2165 = vsub.s32 %v1327, %v2164
  %v2166 = vrot.slane %v1864, %v2165
  %v2167 = vlaneseq
  %v2168 = vshrl.u32 %v2167, 7
  %v2169 = vsub.s32 %v1332, %v2168
  %v2170 = vrot.slane %v1867, %v2169
  %v2171 = vsel %vm1337, %v2170, %v2166
  %v2172 = vlaneseq
  %v2173 = vshrl.u32 %v2172, 7
  %v2174 = vsub.s32 %v1339, %v2173
  %v2175 = vrot.slane %v1870, %v2174
  %v2176 = vsel %vm1344, %v2175, %v2171
  %v2177 = vlaneseq
  %v2178 = vshrl.u32 %v2177, 7
  %v2179 = vsub.s32 %v1346, %v2178
  %v2180 = vrot.slane %v1873, %v2179
  %v2181 = vsel %vm1351, %v2180, %v2176
  %v2182 = vlaneseq
  %v2183 = vshrl.u32 %v2182, 7
  %v2184 = vsub.s32 %v1353, %v2183
  %v2185 = vrot.slane %v1876, %v2184
  %v2186 = vsel %vm1358, %v2185, %v2181
  %v2187 = vlaneseq
  %v2188 = vshrl.u32 %v2187, 7
  %v2189 = vsub.s32 %v1360, %v2188
  %v2190 = vrot.slane %v1879, %v2189
  %v2191 = vsel %vm1365, %v2190, %v2186
  %v2192 = vlaneseq
  %v2193 = vshrl.u32 %v2192, 7
  %v2194 = vsub.s32 %v1367, %v2193
  %v2195 = vrot.slane %v1882, %v2194
  %v2196 = vsel %vm1372, %v2195, %v2191
  %v2197 = vlaneseq
  %v2198 = vshrl.u32 %v2197, 7
  %v2199 = vsub.s32 %v1374, %v2198
  %v2200 = vrot.slane %v1885, %v2199
  %v2201 = vsel %vm1379, %v2200, %v2196
  %v2202 = vlaneseq
  %v2203 = vshrl.u32 %v2202, 7
  %v2204 = vsub.s32 %v1327, %v2203
  %v2205 = vrot.slane %v1888, %v2204
  %v2206 = vlaneseq
  %v2207 = vshrl.u32 %v2206, 7
  %v2208 = vsub.s32 %v1332, %v2207
  %v2209 = vrot.slane %v1891, %v2208
  %v2210 = vsel %vm1337, %v2209, %v2205
  %v2211 = vlaneseq
  %v2212 = vshrl.u32 %v2211, 7
  %v2213 = vsub.s32 %v1339, %v2212
  %v2214 = vrot.slane %v1894, %v2213
  %v2215 = vsel %vm1344, %v2214, %v2210
  %v2216 = vlaneseq
  %v2217 = vshrl.u32 %v2216, 7
  %v2218 = vsub.s32 %v1346, %v2217
  %v2219 = vrot.slane %v1897, %v2218
  %v2220 = vsel %vm1351, %v2219, %v2215
  %v2221 = vlaneseq
  %v2222 = vshrl.u32 %v2221, 7
  %v2223 = vsub.s32 %v1353, %v2222
  %v2224 = vrot.slane %v1900, %v2223
  %v2225 = vsel %vm1358, %v2224, %v2220
  %v2226 = vlaneseq
  %v2227 = vshrl.u32 %v2226, 7
  %v2228 = vsub.s32 %v1360, %v2227
  %v2229 = vrot.slane %v1903, %v2228
  %v2230 = vsel %vm1365, %v2229, %v2225
  %v2231 = vlaneseq
  %v2232 = vshrl.u32 %v2231, 7
  %v2233 = vsub.s32 %v1367, %v2232
  %v2234 = vrot.slane %v1906, %v2233
  %v2235 = vsel %vm1372, %v2234, %v2230
  %v2236 = vlaneseq
  %v2237 = vshrl.u32 %v2236, 7
  %v2238 = vsub.s32 %v1374, %v2237
  %v2239 = vrot.slane %v1909, %v2238
  %v2240 = vsel %vm1379, %v2239, %v2235
  %v2241 = vlaneseq
  %v2242 = vshrl.u32 %v2241, 7
  %v2243 = vsub.s32 %v1327, %v2242
  %v2244 = vrot.slane %v1912, %v2243
  %v2245 = vlaneseq
  %v2246 = vshrl.u32 %v2245, 7
  %v2247 = vsub.s32 %v1332, %v2246
  %v2248 = vrot.slane %v1915, %v2247
  %v2249 = vsel %vm1337, %v2248, %v2244
  %v2250 = vlaneseq
  %v2251 = vshrl.u32 %v2250, 7
  %v2252 = vsub.s32 %v1339, %v2251
  %v2253 = vrot.slane %v1918, %v2252
  %v2254 = vsel %vm1344, %v2253, %v2249
  %v2255 = vlaneseq
  %v2256 = vshrl.u32 %v2255, 7
  %v2257 = vsub.s32 %v1346, %v2256
  %v2258 = vrot.slane %v1921, %v2257
  %v2259 = vsel %vm1351, %v2258, %v2254
  %v2260 = vlaneseq
  %v2261 = vshrl.u32 %v2260, 7
  %v2262 = vsub.s32 %v1353, %v2261
  %v2263 = vrot.slane %v1924, %v2262
  %v2264 = vsel %vm1358, %v2263, %v2259
  %v2265 = vlaneseq
  %v2266 = vshrl.u32 %v2265, 7
  %v2267 = vsub.s32 %v1360, %v2266
  %v2268 = vrot.slane %v1927, %v2267
  %v2269 = vsel %vm1365, %v2268, %v2264
  %v2270 = vlaneseq
  %v2271 = vshrl.u32 %v2270, 7
  %v2272 = vsub.s32 %v1367, %v2271
  %v2273 = vrot.slane %v1930, %v2272
  %v2274 = vsel %vm1372, %v2273, %v2269
  %v2275 = vlaneseq
  %v2276 = vshrl.u32 %v2275, 7
  %v2277 = vsub.s32 %v1374, %v2276
  %v2278 = vrot.slane %v1933, %v2277
  %v2279 = vsel %vm1379, %v2278, %v2274
  %v2280 = vlaneseq
  %v2281 = vshrl.u32 %v2280, 7
  %v2282 = vsub.s32 %v1327, %v2281
  %v2283 = vrot.slane %v1936, %v2282
  %v2284 = vlaneseq
  %v2285 = vshrl.u32 %v2284, 7
  %v2286 = vsub.s32 %v1332, %v2285
  %v2287 = vrot.slane %v1939, %v2286
  %v2288 = vsel %vm1337, %v2287, %v2283
  %v2289 = vlaneseq
  %v2290 = vshrl.u32 %v2289, 7
  %v2291 = vsub.s32 %v1339, %v2290
  %v2292 = vrot.slane %v1942, %v2291
  %v2293 = vsel %vm1344, %v2292, %v2288
  %v2294 = vlaneseq
  %v2295 = vshrl.u32 %v2294, 7
  %v2296 = vsub.s32 %v1346, %v2295
  %v2297 = vrot.slane %v1945, %v2296
  %v2298 = vsel %vm1351, %v2297, %v2293
  %v2299 = vlaneseq
  %v2300 = vshrl.u32 %v2299, 7
  %v2301 = vsub.s32 %v1353, %v2300
  %v2302 = vrot.slane %v1948, %v2301
  %v2303 = vsel %vm1358, %v2302, %v2298
  %v2304 = vlaneseq
  %v2305 = vshrl.u32 %v2304, 7
  %v2306 = vsub.s32 %v1360, %v2305
  %v2307 = vrot.slane %v1951, %v2306
  %v2308 = vsel %vm1365, %v2307, %v2303
  %v2309 = vlaneseq
  %v2310 = vshrl.u32 %v2309, 7
  %v2311 = vsub.s32 %v1367, %v2310
  %v2312 = vrot.slane %v1954, %v2311
  %v2313 = vsel %vm1372, %v2312, %v2308
  %v2314 = vlaneseq
  %v2315 = vshrl.u32 %v2314, 7
  %v2316 = vsub.s32 %v1374, %v2315
  %v2317 = vrot.slane %v1957, %v2316
  %v2318 = vsel %vm1379, %v2317, %v2313
  %v2319 = vlaneseq
  %v2320 = vshrl.u32 %v2319, 7
  %v2321 = vsub.s32 %v1327, %v2320
  %v2322 = vrot.slane %v1960, %v2321
  %v2323 = vlaneseq
  %v2324 = vshrl.u32 %v2323, 7
  %v2325 = vsub.s32 %v1332, %v2324
  %v2326 = vrot.slane %v1963, %v2325
  %v2327 = vsel %vm1337, %v2326, %v2322
  %v2328 = vlaneseq
  %v2329 = vshrl.u32 %v2328, 7
  %v2330 = vsub.s32 %v1339, %v2329
  %v2331 = vrot.slane %v1966, %v2330
  %v2332 = vsel %vm1344, %v2331, %v2327
  %v2333 = vlaneseq
  %v2334 = vshrl.u32 %v2333, 7
  %v2335 = vsub.s32 %v1346, %v2334
  %v2336 = vrot.slane %v1969, %v2335
  %v2337 = vsel %vm1351, %v2336, %v2332
  %v2338 = vlaneseq
  %v2339 = vshrl.u32 %v2338, 7
  %v2340 = vsub.s32 %v1353, %v2339
  %v2341 = vrot.slane %v1972, %v2340
  %v2342 = vsel %vm1358, %v2341, %v2337
  %v2343 = vlaneseq
  %v2344 = vshrl.u32 %v2343, 7
  %v2345 = vsub.s32 %v1360, %v2344
  %v2346 = vrot.slane %v1975, %v2345
  %v2347 = vsel %vm1365, %v2346, %v2342
  %v2348 = vlaneseq
  %v2349 = vshrl.u32 %v2348, 7
  %v2350 = vsub.s32 %v1367, %v2349
  %v2351 = vrot.slane %v1978, %v2350
  %v2352 = vsel %vm1372, %v2351, %v2347
  %v2353 = vlaneseq
  %v2354 = vshrl.u32 %v2353, 7
  %v2355 = vsub.s32 %v1374, %v2354
  %v2356 = vrot.slane %v1981, %v2355
  %v2357 = vsel %vm1379, %v2356, %v2352
  %v2358 = vsel %vm1654, %v2123, %v2084
  %v2359 = vsel %vm1656, %v2162, %v2358
  %v2360 = vsel %vm1658, %v2201, %v2359
  %v2361 = vsel %vm1660, %v2240, %v2360
  %v2362 = vsel %vm1662, %v2279, %v2361
  %v2363 = vsel %vm1664, %v2318, %v2362
  %v2364 = vsel %vm1666, %v2357, %v2363
  %v2366 = vsel %vm1669, %v2364, 0.0
  %2367 = vadd.xlane.f32.xlu0 %v2366
  %v2368 = vpop.xlane.xlu0 %2367
  %v2369 = vld [vmem:[%s4] sm:$0xff]
  %v2370 = vadd.f32 %v2368, %v2369
  %v2371 = vtanh.pop %v2370
  %v2372 = vld [vmem:[%s5] sm:$0xff]
  %2374 = vrot.lane.b32.xlu0 %v2372, 127
  %v2375 = vpop.permute.xlu0 %2374
  %v2377 = vadd.f32 %v2371, %v2375
  %v2378 = vsub.f32 %v2377, -1.0
  %v2379 = vmul.f32 %v2378, 1.5
  %v2380 = vsub.f32 %v2379, 0.5
  %v2381 = vceil.f32 %v2380
  %v2382 = vmax.f32 %v2381, 0.0
  %v2383 = vmin.f32 %v2382, 3.0
  %vm2384 = vcmp.eq.f32.partialorder %v2383, 0.0
  %v2385 = vsel %vm2384, -1.0, 0.0
  %vm2386 = vcmp.eq.f32.partialorder %v2383, 1.0
  %v2387 = vsel %vm2386, -0.33333334, %v2385
  %vm2388 = vcmp.eq.f32.partialorder %v2383, 2.0
  %v2389 = vsel %vm2388, 0.33333334, %v2387
  %vm2390 = vcmp.eq.f32.partialorder %v2383, 3.0
  %v2391 = vsel %vm2390, 1.0, %v2389
  %2393 = vrot.lane.b32.xlu0 %v2391, 1
  %v2394 = vpop.permute.xlu0 %2393
  %vm2396 = vcmask 15368
  %2397 = vst.msk [vmem:[%s6] sm:$0xff] %vm2396, %v2394
  // Predicated region
  $region26: #{encoder_svhn_forward.5} parent=0 // pred_check
    _
  $region27: #{encoder_svhn_forward.5} parent=0 // pred_check_branch
    %2399 = sbr.rel (0) target = $region29
  $region28: #{encoder_svhn_forward.5} parent=0 // pred_region
    _
  $region29: #{encoder_svhn_forward.5} parent=0 // pred_fallthru
    _
  // Predicated region
  $region30: #{encoder_svhn_forward.5} parent=0 // pred_check
    _
  $region31: #{encoder_svhn_forward.5} parent=0 // pred_check_branch
    %2401 = sbr.rel (0) target = $region33
  $region32: #{encoder_svhn_forward.5} parent=0 // pred_region
    _
  $region33: #{encoder_svhn_forward.5} parent=0 // pred_fallthru
    _

</llo_original>
